<compile_context>
chip_gen: v7x
topology: tpu7x:2x2x1
jax: 0.10.0
libtpu: 0.0.40
codegen_flags: <defaults>
</compile_context>

<pallas_src>
import jax
import jax.numpy as jnp
from jax.experimental import pallas as pl
from jax.experimental.pallas import tpu as pltpu

_LANE = 128
_SUBLANE = 8

# Optional micro-opt for VMEM-tight v7x configs: single-buffer the resident
# (constant-index-map) weight/bias blocks.  Off by default for robustness; the
# VMEM budget below already accounts for the default double-buffered footprint.
_SINGLE_BUFFER_RESIDENT = False


def _round_up(v, m):
    return (v + m - 1) // m * m


def _round_down(v, m):
    return (v // m) * m


# -----------------------------------------------------------------------------
# Kernels
# -----------------------------------------------------------------------------
def _cls_head_fused_kernel(x_ref, w_ref, b_ref, o_ref):
    """Pool + Linear fused into one MXU matmul.

    x_ref: (tile_b, C*HW)  batch tile of the flattened feature map
    w_ref: (C*HW, Np)      weight expanded over HW and pre-scaled by 1/HW (resident)
    b_ref: (1, Np)         f32 bias (lane-padded, resident)
    o_ref: (tile_b, Np)    f32 logits tile (lane-padded)
    """
    y = jnp.dot(x_ref[...], w_ref[...], preferred_element_type=jnp.float32)
    o_ref[...] = (y + b_ref[...]).astype(o_ref.dtype)


def _cls_head_twostep_kernel(x_ref, w_ref, b_ref, o_ref):
    """Fallback: explicit pool then Linear (for very large expanded weights).

    x_ref: (tile_b, C, HW)
    w_ref: (C, Np)         weight pre-scaled by 1/HW (resident)
    b_ref: (1, Np)         f32 bias (resident)
    o_ref: (tile_b, Np)    f32 logits tile
    """
    # Sum over HW with f32 accumulation (no materialized f32 copy of the x tile);
    # the 1/HW average is folded into the resident weight.
    pooled = jnp.sum(x_ref[...], axis=-1, dtype=jnp.float32)          # (tile_b, C)
    y = jnp.dot(pooled.astype(w_ref.dtype), w_ref[...],
                preferred_element_type=jnp.float32)
    o_ref[...] = (y + b_ref[...]).astype(o_ref.dtype)


# -----------------------------------------------------------------------------
# Parameter preparation (done ONCE at init, not per forward)
# -----------------------------------------------------------------------------
def cls_head_init(w, b, feature_hw, *, max_fused_weight_bytes=12 * 1024 * 1024):
    """Precompute padded / HW-expanded classifier parameters.

    w: (embed_dim, num_classes)  -- transposed nn.Linear weight
    b: (num_classes,)
    feature_hw: (H, W) of the incoming feature map
    """
    C, N = w.shape
    H, W = feature_hw
    HW = H * W
    Np = _round_up(max(N, 1), _LANE)          # lane-dense output -> unmasked vst

    # Fold the 1/HW averaging into the weight (pool becomes a plain sum / matmul).
    w_scaled = (w.astype(jnp.float32) * (1.0 / float(HW))).astype(w.dtype)
    w_p = jnp.pad(w_scaled, ((0, 0), (0, Np - N))) if Np != N else w_scaled
    b_p = jnp.pad(b, (0, Np - N)) if Np != N else b
    b_p = b_p.astype(jnp.float32).reshape(1, Np)

    fused_bytes = C * HW * Np * w.dtype.itemsize
    fused = fused_bytes <= max_fused_weight_bytes
    if fused:
        # w_e[c*HW + hw, n] = w[c, n] / HW, so that
        #   x.reshape(B, C*HW) @ w_e + b  ==  mean_hw(x) @ w + b.
        w_prep = jnp.broadcast_to(w_p[:, None, :], (C, HW, Np)).reshape(C * HW, Np)
    else:
        w_prep = w_p

    return {"w": w_prep, "b": b_p, "fused": fused,
            "C": C, "N": N, "Np": Np, "HW": HW}


# -----------------------------------------------------------------------------
# Tiling / VMEM budgeting
# -----------------------------------------------------------------------------
def _vmem_budget_bytes():
    """(tile budget, vmem_limit ceiling) derived from this generation's VMEM."""
    cap = 64 * 1024 * 1024
    try:
        info = pltpu.get_tpu_info()
        cap = int(getattr(info, "vmem_capacity_bytes", cap))
    except Exception:
        pass  # query unavailable: assume the small (v7x-like) 64 MiB size
    if cap >= 128 * 1024 * 1024:                       # v5e / v6e (128 MiB)
        return 96 * 1024 * 1024, 110 * 1024 * 1024
    return 40 * 1024 * 1024, 56 * 1024 * 1024          # v7x (64 MiB)


def _select_tile_b(B, per_row_bytes, resident_bytes, budget_bytes, tile_b):
    if tile_b is not None:
        tile_b = max(1, min(int(tile_b), B))
        if tile_b != B:                                 # (8,128) rule on out block
            tile_b = max(_SUBLANE, _round_down(tile_b, _SUBLANE))
        return tile_b

    avail = max(budget_bytes - resident_bytes, per_row_bytes * _SUBLANE)
    max_rows = max(_SUBLANE,
                   min(1024, _round_down(avail // per_row_bytes, _SUBLANE)))

    if B <= _SUBLANE:
        return B                                        # full-dim block is legal
    if B > max_rows:
        return max_rows                                 # VMEM-limited tile
    # Whole batch fits: still split into >= 2 "parallel" tiles (when B allows
    # multiple-of-8 tiles) so both v7x TensorCores get work.
    if B >= 2 * _SUBLANE:
        return min(max_rows, _round_up(pl.cdiv(B, 2), _SUBLANE))
    return B


# -----------------------------------------------------------------------------
# Forward
# -----------------------------------------------------------------------------
def cls_head_forward(x, params, *, tile_b=None):
    """ClsHead forward. x: (B, C, H, W); params from cls_head_init. Returns f32 (B, N)."""
    B, C, H, W = x.shape
    HW, Np, N = params["HW"], params["Np"], params["N"]
    assert C == params["C"] and H * W == HW, "feature map does not match init"
    w_p, b_p = params["w"], params["b"]
    fused = params["fused"]

    budget, limit_cap = _vmem_budget_bytes()

    # Resident (constant-index-map) blocks; account for their buffering.
    res_bufs = 1 if _SINGLE_BUFFER_RESIDENT else 2
    resident = res_bufs * (w_p.size * w_p.dtype.itemsize + b_p.size * b_p.dtype.itemsize)
    # Per batch-row cost of the double-buffered x tile + f32 out tile.
    per_row = 2 * C * HW * x.dtype.itemsize + 2 * Np * 4

    tile_b = _select_tile_b(B, per_row, resident, budget, tile_b)
    grid = (pl.cdiv(B, tile_b),)

    needed = tile_b * per_row + resident
    vmem_limit = int(min(limit_cap,
                         max(needed + needed // 4 + (2 << 20), 32 * 1024 * 1024)))

    resident_kw = ({"pipeline_mode": pl.Buffered(1)}
                   if _SINGLE_BUFFER_RESIDENT else {})

    if fused:
        kernel = _cls_head_fused_kernel
        x_in = x.reshape(B, C * HW)                               # free reshape
        x_spec = pl.BlockSpec((tile_b, C * HW), lambda i: (i, 0))
        w_spec = pl.BlockSpec((C * HW, Np), lambda i: (0, 0), **resident_kw)
    else:
        kernel = _cls_head_twostep_kernel
        x_in = x.reshape(B, C, HW)                                # free reshape
        x_spec = pl.BlockSpec((tile_b, C, HW), lambda i: (i, 0, 0))
        w_spec = pl.BlockSpec((C, Np), lambda i: (0, 0), **resident_kw)
    b_spec = pl.BlockSpec((1, Np), lambda i: (0, 0), **resident_kw)

    out_p = pl.pallas_call(
        kernel,
        out_shape=jax.ShapeDtypeStruct((B, Np), jnp.float32),     # f32 logits
        grid_spec=pltpu.PrefetchScalarGridSpec(
            num_scalar_prefetch=0,
            grid=grid,
            in_specs=[x_spec, w_spec, b_spec],
            out_specs=pl.BlockSpec((tile_b, Np), lambda i: (i, 0)),
        ),
        compiler_params=pltpu.CompilerParams(
            dimension_semantics=("parallel",),     # independent batch tiles (megacore)
            vmem_limit_bytes=vmem_limit,
        ),
    )(x_in, w_p, b_p)

    return out_p[:, :N] if Np != N else out_p


def cls_head_reference(x, w, b):
    pooled = jnp.mean(x, axis=(2, 3))              # adaptive_avg_pool2d(x, 1).flatten(1)
    return pooled @ w + b


if __name__ == "__main__":
    # ClsHead(embed_dim=96, num_classes=10) on a small (8x8) feature map.
    B, C, H, W = 4, 96, 8, 8
    NUM_CLASSES = 10

    key = jax.random.PRNGKey(0)
    kx, kw, kb = jax.random.split(key, 3)

    x = jax.random.normal(kx, (B, C, H, W), dtype=jnp.float32)
    # nn.Linear(embed_dim, num_classes): torch weight is (num_classes, embed_dim);
    # stored here transposed as (embed_dim, num_classes).
    w = jax.random.normal(kw, (C, NUM_CLASSES), dtype=jnp.float32) * 0.05
    b = jax.random.normal(kb, (NUM_CLASSES,), dtype=jnp.float32) * 0.05

    y_ref = cls_head_reference(x, w, b)

    # Default fused (pool-in-matmul) path.
    params_fused = cls_head_init(w, b, (H, W))
    assert params_fused["fused"]
    y = jax.block_until_ready(cls_head_forward(x, params_fused))
    assert y.shape == (B, NUM_CLASSES)
    assert jnp.allclose(y, y_ref, atol=1e-4, rtol=1e-4), "fused path mismatch"

    # Two-step fallback path (forced), used for very large expanded weights
    # (e.g. num_classes=1000 heads).
    params_2s = cls_head_init(w, b, (H, W), max_fused_weight_bytes=0)
    assert not params_2s["fused"]
    y2 = jax.block_until_ready(cls_head_forward(x, params_2s))
    assert y2.shape == (B, NUM_CLASSES)
    assert jnp.allclose(y2, y_ref, atol=1e-4, rtol=1e-4), "two-step path mismatch"

    print("KERNEL_OK")
</pallas_src>

<mosaic_0001>
module attributes {stable_mosaic.version = 11 : i64} {
  func.func @_cls_head_fused_kernel(%arg0: i32, %arg1: memref<4x6144xf32, #tpu.memory_space<vmem>>, %arg2: memref<6144x128xf32, #tpu.memory_space<vmem>>, %arg3: memref<1x128xf32, #tpu.memory_space<vmem>>, %arg4: memref<4x128xf32, #tpu.memory_space<vmem>>) attributes {dimension_semantics = [#tpu.dimension_semantics<parallel>], iteration_bounds = array<i64: 1>, scalar_prefetch = 0 : i64, scratch_operands = 0 : i64, tpu.core_type = #tpu.core_type<tc>, window_params = [{transform_indices = @transform_0, window_bounds = array<i64: 4, 6144>}, {pipeline_mode = #tpu.pipeline_mode<synchronous>, transform_indices = @transform_1, window_bounds = array<i64: 6144, 128>}, {pipeline_mode = #tpu.pipeline_mode<synchronous>, transform_indices = @transform_2, window_bounds = array<i64: 1, 128>}, {transform_indices = @transform_3, window_bounds = array<i64: 4, 128>}]} {
    %c0 = arith.constant 0 : index
    %c0_0 = arith.constant 0 : index
    %0 = vector.load %arg1[%c0, %c0_0] : memref<4x6144xf32, #tpu.memory_space<vmem>>, vector<4x6144xf32>
    %c0_1 = arith.constant 0 : index
    %c0_2 = arith.constant 0 : index
    %1 = vector.load %arg2[%c0_1, %c0_2] : memref<6144x128xf32, #tpu.memory_space<vmem>>, vector<6144x128xf32>
    %cst = arith.constant dense<0.000000e+00> : vector<4x128xf32>
    %2 = tpu.matmul %0, %1, %cst {dimension_numbers = #tpu.dot_dimension_numbers<[1], [0], [0], [1], [0, 0, 1, 1], [], []>} : vector<4x6144xf32>, vector<6144x128xf32>, vector<4x128xf32> -> vector<4x128xf32>
    %c0_3 = arith.constant 0 : index
    %c0_4 = arith.constant 0 : index
    %3 = vector.load %arg3[%c0_3, %c0_4] : memref<1x128xf32, #tpu.memory_space<vmem>>, vector<1x128xf32>
    %4 = vector.broadcast %3 : vector<1x128xf32> to vector<4x128xf32>
    %5 = arith.addf %2, %4 : vector<4x128xf32>
    %c0_5 = arith.constant 0 : index
    %c0_6 = arith.constant 0 : index
    %6 = vector.load %arg4[%c0_5, %c0_6] : memref<4x128xf32, #tpu.memory_space<vmem>>, vector<4x128xf32>
    tpu.vector_store %arg4[%c0_5, %c0_6], %5 {strides = array<i32>} : memref<4x128xf32, #tpu.memory_space<vmem>>, vector<4x128xf32>,
    return
  }
  func.func @transform_0(%arg0: i32) -> (i32, i32) {
    %c0_i32 = arith.constant 0 : i32
    %c0_i32_0 = arith.constant 0 : i32
    return %arg0, %c0_i32 : i32, i32
  }
  func.func @transform_1(%arg0: i32) -> (i32, i32) {
    %c0_i32 = arith.constant 0 : i32
    %c0_i32_0 = arith.constant 0 : i32
    %c0_i32_1 = arith.constant 0 : i32
    return %c0_i32, %c0_i32_0 : i32, i32
  }
  func.func @transform_2(%arg0: i32) -> (i32, i32) {
    %c0_i32 = arith.constant 0 : i32
    %c0_i32_0 = arith.constant 0 : i32
    %c0_i32_1 = arith.constant 0 : i32
    return %c0_i32, %c0_i32_0 : i32, i32
  }
  func.func @transform_3(%arg0: i32) -> (i32, i32) {
    %c0_i32 = arith.constant 0 : i32
    %c0_i32_0 = arith.constant 0 : i32
    return %arg0, %c0_i32 : i32, i32
  }
}

</mosaic_0001>

<llo_original>
// kernel: tpu_custom_call.1
$region0: #{tpu_custom_call.1}
  #allocation0 [shape = 'u32[]', space=smem, size = 0x4, offset = 0x4, fixed_abs, tag = 'smem constant byte address 0x4 - core index']
  #allocation1 [shape = 'u32[144,128]{1,0:T(1,128)}', space=vmem, size = 0x12000, scoped, tag = 'internal scratch']
  %s0 = inlined_call_operand.hbm [shape: f32[4,6144], index: 0, kind: input, shape index: {}]
  %s1 = inlined_call_operand.hbm [shape: f32[6144,128], index: 1, kind: input, shape index: {}]
  %s2 = inlined_call_operand.hbm [shape: f32[1,128], index: 2, kind: input, shape index: {}]
  %s3 = inlined_call_operand.hbm [shape: f32[4,128], index: 3, kind: output, shape index: {}]
  %s4 = sld [smem:[#allocation0]]
  $region34: #{tpu_custom_call.1} parent=0
    _
  %s6 = ssub.s32 1, %s4
  %s7 = scalar_select 0, %s6, %s4
  $region1: #{tpu_custom_call.1} parent=0
    #allocation2 [shape = 'u8[98304]{0}', space=vmem, size = 0x18000, scoped, tag = 'input window, operand 0, single buffered']
    #allocation3 [shape = 's32[1]{0}', space=sflag, size = 0x4, scoped, tag = 'scoped memory for tpu_custom_call.1']
    #allocation4 [shape = 's32[1]{0}', space=sflag, size = 0x4, scoped, tag = 'scoped memory for tpu_custom_call.1']
    #allocation5 [shape = 'u8[3145728]{0}', space=vmem, size = 0x300000, scoped, tag = 'input window, operand 1, single buffered']
    #allocation6 [shape = 's32[1]{0}', space=sflag, size = 0x4, scoped, tag = 'scoped memory for tpu_custom_call.1']
    #allocation7 [shape = 'u8[512]{0}', space=vmem, size = 0x400, scoped, tag = 'input window, operand 2, single buffered']
    #allocation8 [shape = 'u8[2048]{0}', space=vmem, size = 0x800, scoped, tag = 'output window, operand 0, single buffered']
    %8 = vsyncpa [#allocation3], 0
    %9 = vsyncpa [#allocation6], 0
    %10 = vsyncpa [#allocation4], 0
    // Predicated region
    $region2: #{tpu_custom_call.1} parent=1 // pred_check
      _
    $region3: #{tpu_custom_call.1} parent=1 // pred_check_branch
      %12 = sbr.rel (0) target = $region5
    $region4: #{tpu_custom_call.1} parent=1 // pred_region
      %s14 = ssub.s32 3072, 3072
      %15 = vsyncadd [#allocation3], %s14
      %s17 = sshll.u32 [#allocation2], 4
      %s18 = int_to_ptr.vmem [resolvable:$true] %s17
      %20 = dma.hbm_to_vmem [thread:$0]  %s0, 3072, %s18, [#allocation3]
    $region5: #{tpu_custom_call.1} parent=1 // pred_fallthru
      _
    // Predicated region
    $region6: #{tpu_custom_call.1} parent=1 // pred_check
      _
    $region7: #{tpu_custom_call.1} parent=1 // pred_check_branch
      %22 = sbr.rel (0) target = $region9
    $region8: #{tpu_custom_call.1} parent=1 // pred_region
      %s24 = ssub.s32 98304, 98304
      %25 = vsyncadd [#allocation6], %s24
      %s26 = sshll.u32 [#allocation5], 4
      %s27 = int_to_ptr.vmem [resolvable:$true] %s26
      %32 = dma.hbm_to_vmem [thread:$0]  %s1, 98304, %s27, [#allocation6], 128, 128, 8
    $region9: #{tpu_custom_call.1} parent=1 // pred_fallthru
      _
    // Predicated region
    $region10: #{tpu_custom_call.1} parent=1 // pred_check
      _
    $region11: #{tpu_custom_call.1} parent=1 // pred_check_branch
      %34 = sbr.rel (0) target = $region13
    $region12: #{tpu_custom_call.1} parent=1 // pred_region
      %s36 = ssub.s32 16, 16
      %37 = vsyncadd [#allocation6], %s36
      %s39 = sshll.u32 [#allocation7], 4
      %s40 = int_to_ptr.vmem [resolvable:$true] %s39
      %42 = dma.hbm_to_vmem [thread:$0]  %s2, 16, %s40, [#allocation6]
    $region13: #{tpu_custom_call.1} parent=1 // pred_fallthru
      _
    // Predicated region
    $region14: #{tpu_custom_call.1} parent=1 // pred_check
      _
    $region15: #{tpu_custom_call.1} parent=1 // pred_check_branch
      %44 = sbr.rel (0) target = $region17
    $region16: #{tpu_custom_call.1} parent=1 // pred_region
      %45 = dma.done [#allocation3], 3072
    $region17: #{tpu_custom_call.1} parent=1 // pred_fallthru
      _
    // Predicated region
    $region18: #{tpu_custom_call.1} parent=1 // pred_check
      _
    $region19: #{tpu_custom_call.1} parent=1 // pred_check_branch
      %47 = sbr.rel (0) target = $region21
    $region20: #{tpu_custom_call.1} parent=1 // pred_region
      %48 = dma.done [#allocation6], 98304
    $region21: #{tpu_custom_call.1} parent=1 // pred_fallthru
      _
    // Predicated region
    $region22: #{tpu_custom_call.1} parent=1 // pred_check
      _
    $region23: #{tpu_custom_call.1} parent=1 // pred_check_branch
      %50 = sbr.rel (0) target = $region25
    $region24: #{tpu_custom_call.1} parent=1 // pred_region
      %51 = dma.done [#allocation6], 16
    $region25: #{tpu_custom_call.1} parent=1 // pred_fallthru
      _
    %v52 = vld [vmem:[#allocation2] sm:$0xff]
    %v53 = vld [vmem:[#allocation2 + $0x8] sm:$0xff]
    %v54 = vld [vmem:[#allocation2 + $0x10] sm:$0xff]
    %v55 = vld [vmem:[#allocation2 + $0x18] sm:$0xff]
    %v56 = vld [vmem:[#allocation2 + $0x20] sm:$0xff]
    %v57 = vld [vmem:[#allocation2 + $0x28] sm:$0xff]
    %v58 = vld [vmem:[#allocation2 + $0x30] sm:$0xff]
    %v59 = vld [vmem:[#allocation2 + $0x38] sm:$0xff]
    %v60 = vld [vmem:[#allocation2 + $0x40] sm:$0xff]
    %v61 = vld [vmem:[#allocation2 + $0x48] sm:$0xff]
    %v62 = vld [vmem:[#allocation2 + $0x50] sm:$0xff]
    %v63 = vld [vmem:[#allocation2 + $0x58] sm:$0xff]
    %v64 = vld [vmem:[#allocation2 + $0x60] sm:$0xff]
    %v65 = vld [vmem:[#allocation2 + $0x68] sm:$0xff]
    %v66 = vld [vmem:[#allocation2 + $0x70] sm:$0xff]
    %v67 = vld [vmem:[#allocation2 + $0x78] sm:$0xff]
    %v68 = vld [vmem:[#allocation2 + $0x80] sm:$0xff]
    %v69 = vld [vmem:[#allocation2 + $0x88] sm:$0xff]
    %v70 = vld [vmem:[#allocation2 + $0x90] sm:$0xff]
    %v71 = vld [vmem:[#allocation2 + $0x98] sm:$0xff]
    %v72 = vld [vmem:[#allocation2 + $0xa0] sm:$0xff]
    %v73 = vld [vmem:[#allocation2 + $0xa8] sm:$0xff]
    %v74 = vld [vmem:[#allocation2 + $0xb0] sm:$0xff]
    %v75 = vld [vmem:[#allocation2 + $0xb8] sm:$0xff]
    %v76 = vld [vmem:[#allocation5] sm:$0xff]
    %v77 = vld [vmem:[#allocation5 + $0x8] sm:$0xff]
    %v78 = vld [vmem:[#allocation5 + $0x10] sm:$0xff]
    %v79 = vld [vmem:[#allocation5 + $0x18] sm:$0xff]
    %v80 = vld [vmem:[#allocation5 + $0x20] sm:$0xff]
    %v81 = vld [vmem:[#allocation5 + $0x28] sm:$0xff]
    %v82 = vld [vmem:[#allocation5 + $0x30] sm:$0xff]
    %v83 = vld [vmem:[#allocation5 + $0x38] sm:$0xff]
    %v84 = vld [vmem:[#allocation5 + $0x40] sm:$0xff]
    %v85 = vld [vmem:[#allocation5 + $0x48] sm:$0xff]
    %v86 = vld [vmem:[#allocation5 + $0x50] sm:$0xff]
    %v87 = vld [vmem:[#allocation5 + $0x58] sm:$0xff]
    %v88 = vld [vmem:[#allocation5 + $0x60] sm:$0xff]
    %v89 = vld [vmem:[#allocation5 + $0x68] sm:$0xff]
    %v90 = vld [vmem:[#allocation5 + $0x70] sm:$0xff]
    %v91 = vld [vmem:[#allocation5 + $0x78] sm:$0xff]
    %v92 = vld [vmem:[#allocation5 + $0x80] sm:$0xff]
    %v93 = vld [vmem:[#allocation5 + $0x88] sm:$0xff]
    %v94 = vld [vmem:[#allocation5 + $0x90] sm:$0xff]
    %v95 = vld [vmem:[#allocation5 + $0x98] sm:$0xff]
    %v96 = vld [vmem:[#allocation5 + $0xa0] sm:$0xff]
    %v97 = vld [vmem:[#allocation5 + $0xa8] sm:$0xff]
    %v98 = vld [vmem:[#allocation5 + $0xb0] sm:$0xff]
    %v99 = vld [vmem:[#allocation5 + $0xb8] sm:$0xff]
    %v100 = vld [vmem:[#allocation5 + $0xc0] sm:$0xff]
    %v101 = vld [vmem:[#allocation5 + $0xc8] sm:$0xff]
    %v102 = vld [vmem:[#allocation5 + $0xd0] sm:$0xff]
    %v103 = vld [vmem:[#allocation5 + $0xd8] sm:$0xff]
    %v104 = vld [vmem:[#allocation5 + $0xe0] sm:$0xff]
    %v105 = vld [vmem:[#allocation5 + $0xe8] sm:$0xff]
    %v106 = vld [vmem:[#allocation5 + $0xf0] sm:$0xff]
    %v107 = vld [vmem:[#allocation5 + $0xf8] sm:$0xff]
    %v108 = vld [vmem:[#allocation5 + $0x100] sm:$0xff]
    %v109 = vld [vmem:[#allocation5 + $0x108] sm:$0xff]
    %v110 = vld [vmem:[#allocation5 + $0x110] sm:$0xff]
    %v111 = vld [vmem:[#allocation5 + $0x118] sm:$0xff]
    %v112 = vld [vmem:[#allocation5 + $0x120] sm:$0xff]
    %v113 = vld [vmem:[#allocation5 + $0x128] sm:$0xff]
    %v114 = vld [vmem:[#allocation5 + $0x130] sm:$0xff]
    %v115 = vld [vmem:[#allocation5 + $0x138] sm:$0xff]
    %v116 = vld [vmem:[#allocation5 + $0x140] sm:$0xff]
    %v117 = vld [vmem:[#allocation5 + $0x148] sm:$0xff]
    %v118 = vld [vmem:[#allocation5 + $0x150] sm:$0xff]
    %v119 = vld [vmem:[#allocation5 + $0x158] sm:$0xff]
    %v120 = vld [vmem:[#allocation5 + $0x160] sm:$0xff]
    %v121 = vld [vmem:[#allocation5 + $0x168] sm:$0xff]
    %v122 = vld [vmem:[#allocation5 + $0x170] sm:$0xff]
    %v123 = vld [vmem:[#allocation5 + $0x178] sm:$0xff]
    %v124 = vld [vmem:[#allocation5 + $0x180] sm:$0xff]
    %v125 = vld [vmem:[#allocation5 + $0x188] sm:$0xff]
    %v126 = vld [vmem:[#allocation5 + $0x190] sm:$0xff]
    %v127 = vld [vmem:[#allocation5 + $0x198] sm:$0xff]
    %v128 = vld [vmem:[#allocation5 + $0x1a0] sm:$0xff]
    %v129 = vld [vmem:[#allocation5 + $0x1a8] sm:$0xff]
    %v130 = vld [vmem:[#allocation5 + $0x1b0] sm:$0xff]
    %v131 = vld [vmem:[#allocation5 + $0x1b8] sm:$0xff]
    %v132 = vld [vmem:[#allocation5 + $0x1c0] sm:$0xff]
    %v133 = vld [vmem:[#allocation5 + $0x1c8] sm:$0xff]
    %v134 = vld [vmem:[#allocation5 + $0x1d0] sm:$0xff]
    %v135 = vld [vmem:[#allocation5 + $0x1d8] sm:$0xff]
    %v136 = vld [vmem:[#allocation5 + $0x1e0] sm:$0xff]
    %v137 = vld [vmem:[#allocation5 + $0x1e8] sm:$0xff]
    %v138 = vld [vmem:[#allocation5 + $0x1f0] sm:$0xff]
    %v139 = vld [vmem:[#allocation5 + $0x1f8] sm:$0xff]
    %v140 = vld [vmem:[#allocation5 + $0x200] sm:$0xff]
    %v141 = vld [vmem:[#allocation5 + $0x208] sm:$0xff]
    %v142 = vld [vmem:[#allocation5 + $0x210] sm:$0xff]
    %v143 = vld [vmem:[#allocation5 + $0x218] sm:$0xff]
    %v144 = vld [vmem:[#allocation5 + $0x220] sm:$0xff]
    %v145 = vld [vmem:[#allocation5 + $0x228] sm:$0xff]
    %v146 = vld [vmem:[#allocation5 + $0x230] sm:$0xff]
    %v147 = vld [vmem:[#allocation5 + $0x238] sm:$0xff]
    %v148 = vld [vmem:[#allocation5 + $0x240] sm:$0xff]
    %v149 = vld [vmem:[#allocation5 + $0x248] sm:$0xff]
    %v150 = vld [vmem:[#allocation5 + $0x250] sm:$0xff]
    %v151 = vld [vmem:[#allocation5 + $0x258] sm:$0xff]
    %v152 = vld [vmem:[#allocation5 + $0x260] sm:$0xff]
    %v153 = vld [vmem:[#allocation5 + $0x268] sm:$0xff]
    %v154 = vld [vmem:[#allocation5 + $0x270] sm:$0xff]
    %v155 = vld [vmem:[#allocation5 + $0x278] sm:$0xff]
    %v156 = vld [vmem:[#allocation5 + $0x280] sm:$0xff]
    %v157 = vld [vmem:[#allocation5 + $0x288] sm:$0xff]
    %v158 = vld [vmem:[#allocation5 + $0x290] sm:$0xff]
    %v159 = vld [vmem:[#allocation5 + $0x298] sm:$0xff]
    %v160 = vld [vmem:[#allocation5 + $0x2a0] sm:$0xff]
    %v161 = vld [vmem:[#allocation5 + $0x2a8] sm:$0xff]
    %v162 = vld [vmem:[#allocation5 + $0x2b0] sm:$0xff]
    %v163 = vld [vmem:[#allocation5 + $0x2b8] sm:$0xff]
    %v164 = vld [vmem:[#allocation5 + $0x2c0] sm:$0xff]
    %v165 = vld [vmem:[#allocation5 + $0x2c8] sm:$0xff]
    %v166 = vld [vmem:[#allocation5 + $0x2d0] sm:$0xff]
    %v167 = vld [vmem:[#allocation5 + $0x2d8] sm:$0xff]
    %v168 = vld [vmem:[#allocation5 + $0x2e0] sm:$0xff]
    %v169 = vld [vmem:[#allocation5 + $0x2e8] sm:$0xff]
    %v170 = vld [vmem:[#allocation5 + $0x2f0] sm:$0xff]
    %v171 = vld [vmem:[#allocation5 + $0x2f8] sm:$0xff]
    %v172 = vld [vmem:[#allocation5 + $0x300] sm:$0xff]
    %v173 = vld [vmem:[#allocation5 + $0x308] sm:$0xff]
    %v174 = vld [vmem:[#allocation5 + $0x310] sm:$0xff]
    %v175 = vld [vmem:[#allocation5 + $0x318] sm:$0xff]
    %v176 = vld [vmem:[#allocation5 + $0x320] sm:$0xff]
    %v177 = vld [vmem:[#allocation5 + $0x328] sm:$0xff]
    %v178 = vld [vmem:[#allocation5 + $0x330] sm:$0xff]
    %v179 = vld [vmem:[#allocation5 + $0x338] sm:$0xff]
    %v180 = vld [vmem:[#allocation5 + $0x340] sm:$0xff]
    %v181 = vld [vmem:[#allocation5 + $0x348] sm:$0xff]
    %v182 = vld [vmem:[#allocation5 + $0x350] sm:$0xff]
    %v183 = vld [vmem:[#allocation5 + $0x358] sm:$0xff]
    %v184 = vld [vmem:[#allocation5 + $0x360] sm:$0xff]
    %v185 = vld [vmem:[#allocation5 + $0x368] sm:$0xff]
    %v186 = vld [vmem:[#allocation5 + $0x370] sm:$0xff]
    %v187 = vld [vmem:[#allocation5 + $0x378] sm:$0xff]
    %v188 = vld [vmem:[#allocation5 + $0x380] sm:$0xff]
    %v189 = vld [vmem:[#allocation5 + $0x388] sm:$0xff]
    %v190 = vld [vmem:[#allocation5 + $0x390] sm:$0xff]
    %v191 = vld [vmem:[#allocation5 + $0x398] sm:$0xff]
    %v192 = vld [vmem:[#allocation5 + $0x3a0] sm:$0xff]
    %v193 = vld [vmem:[#allocation5 + $0x3a8] sm:$0xff]
    %v194 = vld [vmem:[#allocation5 + $0x3b0] sm:$0xff]
    %v195 = vld [vmem:[#allocation5 + $0x3b8] sm:$0xff]
    %v196 = vld [vmem:[#allocation5 + $0x3c0] sm:$0xff]
    %v197 = vld [vmem:[#allocation5 + $0x3c8] sm:$0xff]
    %v198 = vld [vmem:[#allocation5 + $0x3d0] sm:$0xff]
    %v199 = vld [vmem:[#allocation5 + $0x3d8] sm:$0xff]
    %v200 = vld [vmem:[#allocation5 + $0x3e0] sm:$0xff]
    %v201 = vld [vmem:[#allocation5 + $0x3e8] sm:$0xff]
    %v202 = vld [vmem:[#allocation5 + $0x3f0] sm:$0xff]
    %v203 = vld [vmem:[#allocation5 + $0x3f8] sm:$0xff]
    %v204 = vld [vmem:[#allocation5 + $0x400] sm:$0xff]
    %v205 = vld [vmem:[#allocation5 + $0x408] sm:$0xff]
    %v206 = vld [vmem:[#allocation5 + $0x410] sm:$0xff]
    %v207 = vld [vmem:[#allocation5 + $0x418] sm:$0xff]
    %v208 = vld [vmem:[#allocation5 + $0x420] sm:$0xff]
    %v209 = vld [vmem:[#allocation5 + $0x428] sm:$0xff]
    %v210 = vld [vmem:[#allocation5 + $0x430] sm:$0xff]
    %v211 = vld [vmem:[#allocation5 + $0x438] sm:$0xff]
    %v212 = vld [vmem:[#allocation5 + $0x440] sm:$0xff]
    %v213 = vld [vmem:[#allocation5 + $0x448] sm:$0xff]
    %v214 = vld [vmem:[#allocation5 + $0x450] sm:$0xff]
    %v215 = vld [vmem:[#allocation5 + $0x458] sm:$0xff]
    %v216 = vld [vmem:[#allocation5 + $0x460] sm:$0xff]
    %v217 = vld [vmem:[#allocation5 + $0x468] sm:$0xff]
    %v218 = vld [vmem:[#allocation5 + $0x470] sm:$0xff]
    %v219 = vld [vmem:[#allocation5 + $0x478] sm:$0xff]
    %v220 = vld [vmem:[#allocation5 + $0x480] sm:$0xff]
    %v221 = vld [vmem:[#allocation5 + $0x488] sm:$0xff]
    %v222 = vld [vmem:[#allocation5 + $0x490] sm:$0xff]
    %v223 = vld [vmem:[#allocation5 + $0x498] sm:$0xff]
    %v224 = vld [vmem:[#allocation5 + $0x4a0] sm:$0xff]
    %v225 = vld [vmem:[#allocation5 + $0x4a8] sm:$0xff]
    %v226 = vld [vmem:[#allocation5 + $0x4b0] sm:$0xff]
    %v227 = vld [vmem:[#allocation5 + $0x4b8] sm:$0xff]
    %v228 = vld [vmem:[#allocation5 + $0x4c0] sm:$0xff]
    %v229 = vld [vmem:[#allocation5 + $0x4c8] sm:$0xff]
    %v230 = vld [vmem:[#allocation5 + $0x4d0] sm:$0xff]
    %v231 = vld [vmem:[#allocation5 + $0x4d8] sm:$0xff]
    %v232 = vld [vmem:[#allocation5 + $0x4e0] sm:$0xff]
    %v233 = vld [vmem:[#allocation5 + $0x4e8] sm:$0xff]
    %v234 = vld [vmem:[#allocation5 + $0x4f0] sm:$0xff]
    %v235 = vld [vmem:[#allocation5 + $0x4f8] sm:$0xff]
    %v236 = vld [vmem:[#allocation5 + $0x500] sm:$0xff]
    %v237 = vld [vmem:[#allocation5 + $0x508] sm:$0xff]
    %v238 = vld [vmem:[#allocation5 + $0x510] sm:$0xff]
    %v239 = vld [vmem:[#allocation5 + $0x518] sm:$0xff]
    %v240 = vld [vmem:[#allocation5 + $0x520] sm:$0xff]
    %v241 = vld [vmem:[#allocation5 + $0x528] sm:$0xff]
    %v242 = vld [vmem:[#allocation5 + $0x530] sm:$0xff]
    %v243 = vld [vmem:[#allocation5 + $0x538] sm:$0xff]
    %v244 = vld [vmem:[#allocation5 + $0x540] sm:$0xff]
    %v245 = vld [vmem:[#allocation5 + $0x548] sm:$0xff]
    %v246 = vld [vmem:[#allocation5 + $0x550] sm:$0xff]
    %v247 = vld [vmem:[#allocation5 + $0x558] sm:$0xff]
    %v248 = vld [vmem:[#allocation5 + $0x560] sm:$0xff]
    %v249 = vld [vmem:[#allocation5 + $0x568] sm:$0xff]
    %v250 = vld [vmem:[#allocation5 + $0x570] sm:$0xff]
    %v251 = vld [vmem:[#allocation5 + $0x578] sm:$0xff]
    %v252 = vld [vmem:[#allocation5 + $0x580] sm:$0xff]
    %v253 = vld [vmem:[#allocation5 + $0x588] sm:$0xff]
    %v254 = vld [vmem:[#allocation5 + $0x590] sm:$0xff]
    %v255 = vld [vmem:[#allocation5 + $0x598] sm:$0xff]
    %v256 = vld [vmem:[#allocation5 + $0x5a0] sm:$0xff]
    %v257 = vld [vmem:[#allocation5 + $0x5a8] sm:$0xff]
    %v258 = vld [vmem:[#allocation5 + $0x5b0] sm:$0xff]
    %v259 = vld [vmem:[#allocation5 + $0x5b8] sm:$0xff]
    %v260 = vld [vmem:[#allocation5 + $0x5c0] sm:$0xff]
    %v261 = vld [vmem:[#allocation5 + $0x5c8] sm:$0xff]
    %v262 = vld [vmem:[#allocation5 + $0x5d0] sm:$0xff]
    %v263 = vld [vmem:[#allocation5 + $0x5d8] sm:$0xff]
    %v264 = vld [vmem:[#allocation5 + $0x5e0] sm:$0xff]
    %v265 = vld [vmem:[#allocation5 + $0x5e8] sm:$0xff]
    %v266 = vld [vmem:[#allocation5 + $0x5f0] sm:$0xff]
    %v267 = vld [vmem:[#allocation5 + $0x5f8] sm:$0xff]
    %v268 = vld [vmem:[#allocation5 + $0x600] sm:$0xff]
    %v269 = vld [vmem:[#allocation5 + $0x608] sm:$0xff]
    %v270 = vld [vmem:[#allocation5 + $0x610] sm:$0xff]
    %v271 = vld [vmem:[#allocation5 + $0x618] sm:$0xff]
    %v272 = vld [vmem:[#allocation5 + $0x620] sm:$0xff]
    %v273 = vld [vmem:[#allocation5 + $0x628] sm:$0xff]
    %v274 = vld [vmem:[#allocation5 + $0x630] sm:$0xff]
    %v275 = vld [vmem:[#allocation5 + $0x638] sm:$0xff]
    %v276 = vld [vmem:[#allocation5 + $0x640] sm:$0xff]
    %v277 = vld [vmem:[#allocation5 + $0x648] sm:$0xff]
    %v278 = vld [vmem:[#allocation5 + $0x650] sm:$0xff]
    %v279 = vld [vmem:[#allocation5 + $0x658] sm:$0xff]
    %v280 = vld [vmem:[#allocation5 + $0x660] sm:$0xff]
    %v281 = vld [vmem:[#allocation5 + $0x668] sm:$0xff]
    %v282 = vld [vmem:[#allocation5 + $0x670] sm:$0xff]
    %v283 = vld [vmem:[#allocation5 + $0x678] sm:$0xff]
    %v284 = vld [vmem:[#allocation5 + $0x680] sm:$0xff]
    %v285 = vld [vmem:[#allocation5 + $0x688] sm:$0xff]
    %v286 = vld [vmem:[#allocation5 + $0x690] sm:$0xff]
    %v287 = vld [vmem:[#allocation5 + $0x698] sm:$0xff]
    %v288 = vld [vmem:[#allocation5 + $0x6a0] sm:$0xff]
    %v289 = vld [vmem:[#allocation5 + $0x6a8] sm:$0xff]
    %v290 = vld [vmem:[#allocation5 + $0x6b0] sm:$0xff]
    %v291 = vld [vmem:[#allocation5 + $0x6b8] sm:$0xff]
    %v292 = vld [vmem:[#allocation5 + $0x6c0] sm:$0xff]
    %v293 = vld [vmem:[#allocation5 + $0x6c8] sm:$0xff]
    %v294 = vld [vmem:[#allocation5 + $0x6d0] sm:$0xff]
    %v295 = vld [vmem:[#allocation5 + $0x6d8] sm:$0xff]
    %v296 = vld [vmem:[#allocation5 + $0x6e0] sm:$0xff]
    %v297 = vld [vmem:[#allocation5 + $0x6e8] sm:$0xff]
    %v298 = vld [vmem:[#allocation5 + $0x6f0] sm:$0xff]
    %v299 = vld [vmem:[#allocation5 + $0x6f8] sm:$0xff]
    %v300 = vld [vmem:[#allocation5 + $0x700] sm:$0xff]
    %v301 = vld [vmem:[#allocation5 + $0x708] sm:$0xff]
    %v302 = vld [vmem:[#allocation5 + $0x710] sm:$0xff]
    %v303 = vld [vmem:[#allocation5 + $0x718] sm:$0xff]
    %v304 = vld [vmem:[#allocation5 + $0x720] sm:$0xff]
    %v305 = vld [vmem:[#allocation5 + $0x728] sm:$0xff]
    %v306 = vld [vmem:[#allocation5 + $0x730] sm:$0xff]
    %v307 = vld [vmem:[#allocation5 + $0x738] sm:$0xff]
    %v308 = vld [vmem:[#allocation5 + $0x740] sm:$0xff]
    %v309 = vld [vmem:[#allocation5 + $0x748] sm:$0xff]
    %v310 = vld [vmem:[#allocation5 + $0x750] sm:$0xff]
    %v311 = vld [vmem:[#allocation5 + $0x758] sm:$0xff]
    %v312 = vld [vmem:[#allocation5 + $0x760] sm:$0xff]
    %v313 = vld [vmem:[#allocation5 + $0x768] sm:$0xff]
    %v314 = vld [vmem:[#allocation5 + $0x770] sm:$0xff]
    %v315 = vld [vmem:[#allocation5 + $0x778] sm:$0xff]
    %v316 = vld [vmem:[#allocation5 + $0x780] sm:$0xff]
    %v317 = vld [vmem:[#allocation5 + $0x788] sm:$0xff]
    %v318 = vld [vmem:[#allocation5 + $0x790] sm:$0xff]
    %v319 = vld [vmem:[#allocation5 + $0x798] sm:$0xff]
    %v320 = vld [vmem:[#allocation5 + $0x7a0] sm:$0xff]
    %v321 = vld [vmem:[#allocation5 + $0x7a8] sm:$0xff]
    %v322 = vld [vmem:[#allocation5 + $0x7b0] sm:$0xff]
    %v323 = vld [vmem:[#allocation5 + $0x7b8] sm:$0xff]
    %v324 = vld [vmem:[#allocation5 + $0x7c0] sm:$0xff]
    %v325 = vld [vmem:[#allocation5 + $0x7c8] sm:$0xff]
    %v326 = vld [vmem:[#allocation5 + $0x7d0] sm:$0xff]
    %v327 = vld [vmem:[#allocation5 + $0x7d8] sm:$0xff]
    %v328 = vld [vmem:[#allocation5 + $0x7e0] sm:$0xff]
    %v329 = vld [vmem:[#allocation5 + $0x7e8] sm:$0xff]
    %v330 = vld [vmem:[#allocation5 + $0x7f0] sm:$0xff]
    %v331 = vld [vmem:[#allocation5 + $0x7f8] sm:$0xff]
    %v332 = vld [vmem:[#allocation5 + $0x800] sm:$0xff]
    %v333 = vld [vmem:[#allocation5 + $0x808] sm:$0xff]
    %v334 = vld [vmem:[#allocation5 + $0x810] sm:$0xff]
    %v335 = vld [vmem:[#allocation5 + $0x818] sm:$0xff]
    %v336 = vld [vmem:[#allocation5 + $0x820] sm:$0xff]
    %v337 = vld [vmem:[#allocation5 + $0x828] sm:$0xff]
    %v338 = vld [vmem:[#allocation5 + $0x830] sm:$0xff]
    %v339 = vld [vmem:[#allocation5 + $0x838] sm:$0xff]
    %v340 = vld [vmem:[#allocation5 + $0x840] sm:$0xff]
    %v341 = vld [vmem:[#allocation5 + $0x848] sm:$0xff]
    %v342 = vld [vmem:[#allocation5 + $0x850] sm:$0xff]
    %v343 = vld [vmem:[#allocation5 + $0x858] sm:$0xff]
    %v344 = vld [vmem:[#allocation5 + $0x860] sm:$0xff]
    %v345 = vld [vmem:[#allocation5 + $0x868] sm:$0xff]
    %v346 = vld [vmem:[#allocation5 + $0x870] sm:$0xff]
    %v347 = vld [vmem:[#allocation5 + $0x878] sm:$0xff]
    %v348 = vld [vmem:[#allocation5 + $0x880] sm:$0xff]
    %v349 = vld [vmem:[#allocation5 + $0x888] sm:$0xff]
    %v350 = vld [vmem:[#allocation5 + $0x890] sm:$0xff]
    %v351 = vld [vmem:[#allocation5 + $0x898] sm:$0xff]
    %v352 = vld [vmem:[#allocation5 + $0x8a0] sm:$0xff]
    %v353 = vld [vmem:[#allocation5 + $0x8a8] sm:$0xff]
    %v354 = vld [vmem:[#allocation5 + $0x8b0] sm:$0xff]
    %v355 = vld [vmem:[#allocation5 + $0x8b8] sm:$0xff]
    %v356 = vld [vmem:[#allocation5 + $0x8c0] sm:$0xff]
    %v357 = vld [vmem:[#allocation5 + $0x8c8] sm:$0xff]
    %v358 = vld [vmem:[#allocation5 + $0x8d0] sm:$0xff]
    %v359 = vld [vmem:[#allocation5 + $0x8d8] sm:$0xff]
    %v360 = vld [vmem:[#allocation5 + $0x8e0] sm:$0xff]
    %v361 = vld [vmem:[#allocation5 + $0x8e8] sm:$0xff]
    %v362 = vld [vmem:[#allocation5 + $0x8f0] sm:$0xff]
    %v363 = vld [vmem:[#allocation5 + $0x8f8] sm:$0xff]
    %v364 = vld [vmem:[#allocation5 + $0x900] sm:$0xff]
    %v365 = vld [vmem:[#allocation5 + $0x908] sm:$0xff]
    %v366 = vld [vmem:[#allocation5 + $0x910] sm:$0xff]
    %v367 = vld [vmem:[#allocation5 + $0x918] sm:$0xff]
    %v368 = vld [vmem:[#allocation5 + $0x920] sm:$0xff]
    %v369 = vld [vmem:[#allocation5 + $0x928] sm:$0xff]
    %v370 = vld [vmem:[#allocation5 + $0x930] sm:$0xff]
    %v371 = vld [vmem:[#allocation5 + $0x938] sm:$0xff]
    %v372 = vld [vmem:[#allocation5 + $0x940] sm:$0xff]
    %v373 = vld [vmem:[#allocation5 + $0x948] sm:$0xff]
    %v374 = vld [vmem:[#allocation5 + $0x950] sm:$0xff]
    %v375 = vld [vmem:[#allocation5 + $0x958] sm:$0xff]
    %v376 = vld [vmem:[#allocation5 + $0x960] sm:$0xff]
    %v377 = vld [vmem:[#allocation5 + $0x968] sm:$0xff]
    %v378 = vld [vmem:[#allocation5 + $0x970] sm:$0xff]
    %v379 = vld [vmem:[#allocation5 + $0x978] sm:$0xff]
    %v380 = vld [vmem:[#allocation5 + $0x980] sm:$0xff]
    %v381 = vld [vmem:[#allocation5 + $0x988] sm:$0xff]
    %v382 = vld [vmem:[#allocation5 + $0x990] sm:$0xff]
    %v383 = vld [vmem:[#allocation5 + $0x998] sm:$0xff]
    %v384 = vld [vmem:[#allocation5 + $0x9a0] sm:$0xff]
    %v385 = vld [vmem:[#allocation5 + $0x9a8] sm:$0xff]
    %v386 = vld [vmem:[#allocation5 + $0x9b0] sm:$0xff]
    %v387 = vld [vmem:[#allocation5 + $0x9b8] sm:$0xff]
    %v388 = vld [vmem:[#allocation5 + $0x9c0] sm:$0xff]
    %v389 = vld [vmem:[#allocation5 + $0x9c8] sm:$0xff]
    %v390 = vld [vmem:[#allocation5 + $0x9d0] sm:$0xff]
    %v391 = vld [vmem:[#allocation5 + $0x9d8] sm:$0xff]
    %v392 = vld [vmem:[#allocation5 + $0x9e0] sm:$0xff]
    %v393 = vld [vmem:[#allocation5 + $0x9e8] sm:$0xff]
    %v394 = vld [vmem:[#allocation5 + $0x9f0] sm:$0xff]
    %v395 = vld [vmem:[#allocation5 + $0x9f8] sm:$0xff]
    %v396 = vld [vmem:[#allocation5 + $0xa00] sm:$0xff]
    %v397 = vld [vmem:[#allocation5 + $0xa08] sm:$0xff]
    %v398 = vld [vmem:[#allocation5 + $0xa10] sm:$0xff]
    %v399 = vld [vmem:[#allocation5 + $0xa18] sm:$0xff]
    %v400 = vld [vmem:[#allocation5 + $0xa20] sm:$0xff]
    %v401 = vld [vmem:[#allocation5 + $0xa28] sm:$0xff]
    %v402 = vld [vmem:[#allocation5 + $0xa30] sm:$0xff]
    %v403 = vld [vmem:[#allocation5 + $0xa38] sm:$0xff]
    %v404 = vld [vmem:[#allocation5 + $0xa40] sm:$0xff]
    %v405 = vld [vmem:[#allocation5 + $0xa48] sm:$0xff]
    %v406 = vld [vmem:[#allocation5 + $0xa50] sm:$0xff]
    %v407 = vld [vmem:[#allocation5 + $0xa58] sm:$0xff]
    %v408 = vld [vmem:[#allocation5 + $0xa60] sm:$0xff]
    %v409 = vld [vmem:[#allocation5 + $0xa68] sm:$0xff]
    %v410 = vld [vmem:[#allocation5 + $0xa70] sm:$0xff]
    %v411 = vld [vmem:[#allocation5 + $0xa78] sm:$0xff]
    %v412 = vld [vmem:[#allocation5 + $0xa80] sm:$0xff]
    %v413 = vld [vmem:[#allocation5 + $0xa88] sm:$0xff]
    %v414 = vld [vmem:[#allocation5 + $0xa90] sm:$0xff]
    %v415 = vld [vmem:[#allocation5 + $0xa98] sm:$0xff]
    %v416 = vld [vmem:[#allocation5 + $0xaa0] sm:$0xff]
    %v417 = vld [vmem:[#allocation5 + $0xaa8] sm:$0xff]
    %v418 = vld [vmem:[#allocation5 + $0xab0] sm:$0xff]
    %v419 = vld [vmem:[#allocation5 + $0xab8] sm:$0xff]
    %v420 = vld [vmem:[#allocation5 + $0xac0] sm:$0xff]
    %v421 = vld [vmem:[#allocation5 + $0xac8] sm:$0xff]
    %v422 = vld [vmem:[#allocation5 + $0xad0] sm:$0xff]
    %v423 = vld [vmem:[#allocation5 + $0xad8] sm:$0xff]
    %v424 = vld [vmem:[#allocation5 + $0xae0] sm:$0xff]
    %v425 = vld [vmem:[#allocation5 + $0xae8] sm:$0xff]
    %v426 = vld [vmem:[#allocation5 + $0xaf0] sm:$0xff]
    %v427 = vld [vmem:[#allocation5 + $0xaf8] sm:$0xff]
    %v428 = vld [vmem:[#allocation5 + $0xb00] sm:$0xff]
    %v429 = vld [vmem:[#allocation5 + $0xb08] sm:$0xff]
    %v430 = vld [vmem:[#allocation5 + $0xb10] sm:$0xff]
    %v431 = vld [vmem:[#allocation5 + $0xb18] sm:$0xff]
    %v432 = vld [vmem:[#allocation5 + $0xb20] sm:$0xff]
    %v433 = vld [vmem:[#allocation5 + $0xb28] sm:$0xff]
    %v434 = vld [vmem:[#allocation5 + $0xb30] sm:$0xff]
    %v435 = vld [vmem:[#allocation5 + $0xb38] sm:$0xff]
    %v436 = vld [vmem:[#allocation5 + $0xb40] sm:$0xff]
    %v437 = vld [vmem:[#allocation5 + $0xb48] sm:$0xff]
    %v438 = vld [vmem:[#allocation5 + $0xb50] sm:$0xff]
    %v439 = vld [vmem:[#allocation5 + $0xb58] sm:$0xff]
    %v440 = vld [vmem:[#allocation5 + $0xb60] sm:$0xff]
    %v441 = vld [vmem:[#allocation5 + $0xb68] sm:$0xff]
    %v442 = vld [vmem:[#allocation5 + $0xb70] sm:$0xff]
    %v443 = vld [vmem:[#allocation5 + $0xb78] sm:$0xff]
    %v444 = vld [vmem:[#allocation5 + $0xb80] sm:$0xff]
    %v445 = vld [vmem:[#allocation5 + $0xb88] sm:$0xff]
    %v446 = vld [vmem:[#allocation5 + $0xb90] sm:$0xff]
    %v447 = vld [vmem:[#allocation5 + $0xb98] sm:$0xff]
    %v448 = vld [vmem:[#allocation5 + $0xba0] sm:$0xff]
    %v449 = vld [vmem:[#allocation5 + $0xba8] sm:$0xff]
    %v450 = vld [vmem:[#allocation5 + $0xbb0] sm:$0xff]
    %v451 = vld [vmem:[#allocation5 + $0xbb8] sm:$0xff]
    %v452 = vld [vmem:[#allocation5 + $0xbc0] sm:$0xff]
    %v453 = vld [vmem:[#allocation5 + $0xbc8] sm:$0xff]
    %v454 = vld [vmem:[#allocation5 + $0xbd0] sm:$0xff]
    %v455 = vld [vmem:[#allocation5 + $0xbd8] sm:$0xff]
    %v456 = vld [vmem:[#allocation5 + $0xbe0] sm:$0xff]
    %v457 = vld [vmem:[#allocation5 + $0xbe8] sm:$0xff]
    %v458 = vld [vmem:[#allocation5 + $0xbf0] sm:$0xff]
    %v459 = vld [vmem:[#allocation5 + $0xbf8] sm:$0xff]
    %v460 = vld [vmem:[#allocation5 + $0xc00] sm:$0xff]
    %v461 = vld [vmem:[#allocation5 + $0xc08] sm:$0xff]
    %v462 = vld [vmem:[#allocation5 + $0xc10] sm:$0xff]
    %v463 = vld [vmem:[#allocation5 + $0xc18] sm:$0xff]
    %v464 = vld [vmem:[#allocation5 + $0xc20] sm:$0xff]
    %v465 = vld [vmem:[#allocation5 + $0xc28] sm:$0xff]
    %v466 = vld [vmem:[#allocation5 + $0xc30] sm:$0xff]
    %v467 = vld [vmem:[#allocation5 + $0xc38] sm:$0xff]
    %v468 = vld [vmem:[#allocation5 + $0xc40] sm:$0xff]
    %v469 = vld [vmem:[#allocation5 + $0xc48] sm:$0xff]
    %v470 = vld [vmem:[#allocation5 + $0xc50] sm:$0xff]
    %v471 = vld [vmem:[#allocation5 + $0xc58] sm:$0xff]
    %v472 = vld [vmem:[#allocation5 + $0xc60] sm:$0xff]
    %v473 = vld [vmem:[#allocation5 + $0xc68] sm:$0xff]
    %v474 = vld [vmem:[#allocation5 + $0xc70] sm:$0xff]
    %v475 = vld [vmem:[#allocation5 + $0xc78] sm:$0xff]
    %v476 = vld [vmem:[#allocation5 + $0xc80] sm:$0xff]
    %v477 = vld [vmem:[#allocation5 + $0xc88] sm:$0xff]
    %v478 = vld [vmem:[#allocation5 + $0xc90] sm:$0xff]
    %v479 = vld [vmem:[#allocation5 + $0xc98] sm:$0xff]
    %v480 = vld [vmem:[#allocation5 + $0xca0] sm:$0xff]
    %v481 = vld [vmem:[#allocation5 + $0xca8] sm:$0xff]
    %v482 = vld [vmem:[#allocation5 + $0xcb0] sm:$0xff]
    %v483 = vld [vmem:[#allocation5 + $0xcb8] sm:$0xff]
    %v484 = vld [vmem:[#allocation5 + $0xcc0] sm:$0xff]
    %v485 = vld [vmem:[#allocation5 + $0xcc8] sm:$0xff]
    %v486 = vld [vmem:[#allocation5 + $0xcd0] sm:$0xff]
    %v487 = vld [vmem:[#allocation5 + $0xcd8] sm:$0xff]
    %v488 = vld [vmem:[#allocation5 + $0xce0] sm:$0xff]
    %v489 = vld [vmem:[#allocation5 + $0xce8] sm:$0xff]
    %v490 = vld [vmem:[#allocation5 + $0xcf0] sm:$0xff]
    %v491 = vld [vmem:[#allocation5 + $0xcf8] sm:$0xff]
    %v492 = vld [vmem:[#allocation5 + $0xd00] sm:$0xff]
    %v493 = vld [vmem:[#allocation5 + $0xd08] sm:$0xff]
    %v494 = vld [vmem:[#allocation5 + $0xd10] sm:$0xff]
    %v495 = vld [vmem:[#allocation5 + $0xd18] sm:$0xff]
    %v496 = vld [vmem:[#allocation5 + $0xd20] sm:$0xff]
    %v497 = vld [vmem:[#allocation5 + $0xd28] sm:$0xff]
    %v498 = vld [vmem:[#allocation5 + $0xd30] sm:$0xff]
    %v499 = vld [vmem:[#allocation5 + $0xd38] sm:$0xff]
    %v500 = vld [vmem:[#allocation5 + $0xd40] sm:$0xff]
    %v501 = vld [vmem:[#allocation5 + $0xd48] sm:$0xff]
    %v502 = vld [vmem:[#allocation5 + $0xd50] sm:$0xff]
    %v503 = vld [vmem:[#allocation5 + $0xd58] sm:$0xff]
    %v504 = vld [vmem:[#allocation5 + $0xd60] sm:$0xff]
    %v505 = vld [vmem:[#allocation5 + $0xd68] sm:$0xff]
    %v506 = vld [vmem:[#allocation5 + $0xd70] sm:$0xff]
    %v507 = vld [vmem:[#allocation5 + $0xd78] sm:$0xff]
    %v508 = vld [vmem:[#allocation5 + $0xd80] sm:$0xff]
    %v509 = vld [vmem:[#allocation5 + $0xd88] sm:$0xff]
    %v510 = vld [vmem:[#allocation5 + $0xd90] sm:$0xff]
    %v511 = vld [vmem:[#allocation5 + $0xd98] sm:$0xff]
    %v512 = vld [vmem:[#allocation5 + $0xda0] sm:$0xff]
    %v513 = vld [vmem:[#allocation5 + $0xda8] sm:$0xff]
    %v514 = vld [vmem:[#allocation5 + $0xdb0] sm:$0xff]
    %v515 = vld [vmem:[#allocation5 + $0xdb8] sm:$0xff]
    %v516 = vld [vmem:[#allocation5 + $0xdc0] sm:$0xff]
    %v517 = vld [vmem:[#allocation5 + $0xdc8] sm:$0xff]
    %v518 = vld [vmem:[#allocation5 + $0xdd0] sm:$0xff]
    %v519 = vld [vmem:[#allocation5 + $0xdd8] sm:$0xff]
    %v520 = vld [vmem:[#allocation5 + $0xde0] sm:$0xff]
    %v521 = vld [vmem:[#allocation5 + $0xde8] sm:$0xff]
    %v522 = vld [vmem:[#allocation5 + $0xdf0] sm:$0xff]
    %v523 = vld [vmem:[#allocation5 + $0xdf8] sm:$0xff]
    %v524 = vld [vmem:[#allocation5 + $0xe00] sm:$0xff]
    %v525 = vld [vmem:[#allocation5 + $0xe08] sm:$0xff]
    %v526 = vld [vmem:[#allocation5 + $0xe10] sm:$0xff]
    %v527 = vld [vmem:[#allocation5 + $0xe18] sm:$0xff]
    %v528 = vld [vmem:[#allocation5 + $0xe20] sm:$0xff]
    %v529 = vld [vmem:[#allocation5 + $0xe28] sm:$0xff]
    %v530 = vld [vmem:[#allocation5 + $0xe30] sm:$0xff]
    %v531 = vld [vmem:[#allocation5 + $0xe38] sm:$0xff]
    %v532 = vld [vmem:[#allocation5 + $0xe40] sm:$0xff]
    %v533 = vld [vmem:[#allocation5 + $0xe48] sm:$0xff]
    %v534 = vld [vmem:[#allocation5 + $0xe50] sm:$0xff]
    %v535 = vld [vmem:[#allocation5 + $0xe58] sm:$0xff]
    %v536 = vld [vmem:[#allocation5 + $0xe60] sm:$0xff]
    %v537 = vld [vmem:[#allocation5 + $0xe68] sm:$0xff]
    %v538 = vld [vmem:[#allocation5 + $0xe70] sm:$0xff]
    %v539 = vld [vmem:[#allocation5 + $0xe78] sm:$0xff]
    %v540 = vld [vmem:[#allocation5 + $0xe80] sm:$0xff]
    %v541 = vld [vmem:[#allocation5 + $0xe88] sm:$0xff]
    %v542 = vld [vmem:[#allocation5 + $0xe90] sm:$0xff]
    %v543 = vld [vmem:[#allocation5 + $0xe98] sm:$0xff]
    %v544 = vld [vmem:[#allocation5 + $0xea0] sm:$0xff]
    %v545 = vld [vmem:[#allocation5 + $0xea8] sm:$0xff]
    %v546 = vld [vmem:[#allocation5 + $0xeb0] sm:$0xff]
    %v547 = vld [vmem:[#allocation5 + $0xeb8] sm:$0xff]
    %v548 = vld [vmem:[#allocation5 + $0xec0] sm:$0xff]
    %v549 = vld [vmem:[#allocation5 + $0xec8] sm:$0xff]
    %v550 = vld [vmem:[#allocation5 + $0xed0] sm:$0xff]
    %v551 = vld [vmem:[#allocation5 + $0xed8] sm:$0xff]
    %v552 = vld [vmem:[#allocation5 + $0xee0] sm:$0xff]
    %v553 = vld [vmem:[#allocation5 + $0xee8] sm:$0xff]
    %v554 = vld [vmem:[#allocation5 + $0xef0] sm:$0xff]
    %v555 = vld [vmem:[#allocation5 + $0xef8] sm:$0xff]
    %v556 = vld [vmem:[#allocation5 + $0xf00] sm:$0xff]
    %v557 = vld [vmem:[#allocation5 + $0xf08] sm:$0xff]
    %v558 = vld [vmem:[#allocation5 + $0xf10] sm:$0xff]
    %v559 = vld [vmem:[#allocation5 + $0xf18] sm:$0xff]
    %v560 = vld [vmem:[#allocation5 + $0xf20] sm:$0xff]
    %v561 = vld [vmem:[#allocation5 + $0xf28] sm:$0xff]
    %v562 = vld [vmem:[#allocation5 + $0xf30] sm:$0xff]
    %v563 = vld [vmem:[#allocation5 + $0xf38] sm:$0xff]
    %v564 = vld [vmem:[#allocation5 + $0xf40] sm:$0xff]
    %v565 = vld [vmem:[#allocation5 + $0xf48] sm:$0xff]
    %v566 = vld [vmem:[#allocation5 + $0xf50] sm:$0xff]
    %v567 = vld [vmem:[#allocation5 + $0xf58] sm:$0xff]
    %v568 = vld [vmem:[#allocation5 + $0xf60] sm:$0xff]
    %v569 = vld [vmem:[#allocation5 + $0xf68] sm:$0xff]
    %v570 = vld [vmem:[#allocation5 + $0xf70] sm:$0xff]
    %v571 = vld [vmem:[#allocation5 + $0xf78] sm:$0xff]
    %v572 = vld [vmem:[#allocation5 + $0xf80] sm:$0xff]
    %v573 = vld [vmem:[#allocation5 + $0xf88] sm:$0xff]
    %v574 = vld [vmem:[#allocation5 + $0xf90] sm:$0xff]
    %v575 = vld [vmem:[#allocation5 + $0xf98] sm:$0xff]
    %v576 = vld [vmem:[#allocation5 + $0xfa0] sm:$0xff]
    %v577 = vld [vmem:[#allocation5 + $0xfa8] sm:$0xff]
    %v578 = vld [vmem:[#allocation5 + $0xfb0] sm:$0xff]
    %v579 = vld [vmem:[#allocation5 + $0xfb8] sm:$0xff]
    %v580 = vld [vmem:[#allocation5 + $0xfc0] sm:$0xff]
    %v581 = vld [vmem:[#allocation5 + $0xfc8] sm:$0xff]
    %v582 = vld [vmem:[#allocation5 + $0xfd0] sm:$0xff]
    %v583 = vld [vmem:[#allocation5 + $0xfd8] sm:$0xff]
    %v584 = vld [vmem:[#allocation5 + $0xfe0] sm:$0xff]
    %v585 = vld [vmem:[#allocation5 + $0xfe8] sm:$0xff]
    %v586 = vld [vmem:[#allocation5 + $0xff0] sm:$0xff]
    %v587 = vld [vmem:[#allocation5 + $0xff8] sm:$0xff]
    %v588 = vld [vmem:[#allocation5 + $0x1000] sm:$0xff]
    %v589 = vld [vmem:[#allocation5 + $0x1008] sm:$0xff]
    %v590 = vld [vmem:[#allocation5 + $0x1010] sm:$0xff]
    %v591 = vld [vmem:[#allocation5 + $0x1018] sm:$0xff]
    %v592 = vld [vmem:[#allocation5 + $0x1020] sm:$0xff]
    %v593 = vld [vmem:[#allocation5 + $0x1028] sm:$0xff]
    %v594 = vld [vmem:[#allocation5 + $0x1030] sm:$0xff]
    %v595 = vld [vmem:[#allocation5 + $0x1038] sm:$0xff]
    %v596 = vld [vmem:[#allocation5 + $0x1040] sm:$0xff]
    %v597 = vld [vmem:[#allocation5 + $0x1048] sm:$0xff]
    %v598 = vld [vmem:[#allocation5 + $0x1050] sm:$0xff]
    %v599 = vld [vmem:[#allocation5 + $0x1058] sm:$0xff]
    %v600 = vld [vmem:[#allocation5 + $0x1060] sm:$0xff]
    %v601 = vld [vmem:[#allocation5 + $0x1068] sm:$0xff]
    %v602 = vld [vmem:[#allocation5 + $0x1070] sm:$0xff]
    %v603 = vld [vmem:[#allocation5 + $0x1078] sm:$0xff]
    %v604 = vld [vmem:[#allocation5 + $0x1080] sm:$0xff]
    %v605 = vld [vmem:[#allocation5 + $0x1088] sm:$0xff]
    %v606 = vld [vmem:[#allocation5 + $0x1090] sm:$0xff]
    %v607 = vld [vmem:[#allocation5 + $0x1098] sm:$0xff]
    %v608 = vld [vmem:[#allocation5 + $0x10a0] sm:$0xff]
    %v609 = vld [vmem:[#allocation5 + $0x10a8] sm:$0xff]
    %v610 = vld [vmem:[#allocation5 + $0x10b0] sm:$0xff]
    %v611 = vld [vmem:[#allocation5 + $0x10b8] sm:$0xff]
    %v612 = vld [vmem:[#allocation5 + $0x10c0] sm:$0xff]
    %v613 = vld [vmem:[#allocation5 + $0x10c8] sm:$0xff]
    %v614 = vld [vmem:[#allocation5 + $0x10d0] sm:$0xff]
    %v615 = vld [vmem:[#allocation5 + $0x10d8] sm:$0xff]
    %v616 = vld [vmem:[#allocation5 + $0x10e0] sm:$0xff]
    %v617 = vld [vmem:[#allocation5 + $0x10e8] sm:$0xff]
    %v618 = vld [vmem:[#allocation5 + $0x10f0] sm:$0xff]
    %v619 = vld [vmem:[#allocation5 + $0x10f8] sm:$0xff]
    %v620 = vld [vmem:[#allocation5 + $0x1100] sm:$0xff]
    %v621 = vld [vmem:[#allocation5 + $0x1108] sm:$0xff]
    %v622 = vld [vmem:[#allocation5 + $0x1110] sm:$0xff]
    %v623 = vld [vmem:[#allocation5 + $0x1118] sm:$0xff]
    %v624 = vld [vmem:[#allocation5 + $0x1120] sm:$0xff]
    %v625 = vld [vmem:[#allocation5 + $0x1128] sm:$0xff]
    %v626 = vld [vmem:[#allocation5 + $0x1130] sm:$0xff]
    %v627 = vld [vmem:[#allocation5 + $0x1138] sm:$0xff]
    %v628 = vld [vmem:[#allocation5 + $0x1140] sm:$0xff]
    %v629 = vld [vmem:[#allocation5 + $0x1148] sm:$0xff]
    %v630 = vld [vmem:[#allocation5 + $0x1150] sm:$0xff]
    %v631 = vld [vmem:[#allocation5 + $0x1158] sm:$0xff]
    %v632 = vld [vmem:[#allocation5 + $0x1160] sm:$0xff]
    %v633 = vld [vmem:[#allocation5 + $0x1168] sm:$0xff]
    %v634 = vld [vmem:[#allocation5 + $0x1170] sm:$0xff]
    %v635 = vld [vmem:[#allocation5 + $0x1178] sm:$0xff]
    %v636 = vld [vmem:[#allocation5 + $0x1180] sm:$0xff]
    %v637 = vld [vmem:[#allocation5 + $0x1188] sm:$0xff]
    %v638 = vld [vmem:[#allocation5 + $0x1190] sm:$0xff]
    %v639 = vld [vmem:[#allocation5 + $0x1198] sm:$0xff]
    %v640 = vld [vmem:[#allocation5 + $0x11a0] sm:$0xff]
    %v641 = vld [vmem:[#allocation5 + $0x11a8] sm:$0xff]
    %v642 = vld [vmem:[#allocation5 + $0x11b0] sm:$0xff]
    %v643 = vld [vmem:[#allocation5 + $0x11b8] sm:$0xff]
    %v644 = vld [vmem:[#allocation5 + $0x11c0] sm:$0xff]
    %v645 = vld [vmem:[#allocation5 + $0x11c8] sm:$0xff]
    %v646 = vld [vmem:[#allocation5 + $0x11d0] sm:$0xff]
    %v647 = vld [vmem:[#allocation5 + $0x11d8] sm:$0xff]
    %v648 = vld [vmem:[#allocation5 + $0x11e0] sm:$0xff]
    %v649 = vld [vmem:[#allocation5 + $0x11e8] sm:$0xff]
    %v650 = vld [vmem:[#allocation5 + $0x11f0] sm:$0xff]
    %v651 = vld [vmem:[#allocation5 + $0x11f8] sm:$0xff]
    %v652 = vld [vmem:[#allocation5 + $0x1200] sm:$0xff]
    %v653 = vld [vmem:[#allocation5 + $0x1208] sm:$0xff]
    %v654 = vld [vmem:[#allocation5 + $0x1210] sm:$0xff]
    %v655 = vld [vmem:[#allocation5 + $0x1218] sm:$0xff]
    %v656 = vld [vmem:[#allocation5 + $0x1220] sm:$0xff]
    %v657 = vld [vmem:[#allocation5 + $0x1228] sm:$0xff]
    %v658 = vld [vmem:[#allocation5 + $0x1230] sm:$0xff]
    %v659 = vld [vmem:[#allocation5 + $0x1238] sm:$0xff]
    %v660 = vld [vmem:[#allocation5 + $0x1240] sm:$0xff]
    %v661 = vld [vmem:[#allocation5 + $0x1248] sm:$0xff]
    %v662 = vld [vmem:[#allocation5 + $0x1250] sm:$0xff]
    %v663 = vld [vmem:[#allocation5 + $0x1258] sm:$0xff]
    %v664 = vld [vmem:[#allocation5 + $0x1260] sm:$0xff]
    %v665 = vld [vmem:[#allocation5 + $0x1268] sm:$0xff]
    %v666 = vld [vmem:[#allocation5 + $0x1270] sm:$0xff]
    %v667 = vld [vmem:[#allocation5 + $0x1278] sm:$0xff]
    %v668 = vld [vmem:[#allocation5 + $0x1280] sm:$0xff]
    %v669 = vld [vmem:[#allocation5 + $0x1288] sm:$0xff]
    %v670 = vld [vmem:[#allocation5 + $0x1290] sm:$0xff]
    %v671 = vld [vmem:[#allocation5 + $0x1298] sm:$0xff]
    %v672 = vld [vmem:[#allocation5 + $0x12a0] sm:$0xff]
    %v673 = vld [vmem:[#allocation5 + $0x12a8] sm:$0xff]
    %v674 = vld [vmem:[#allocation5 + $0x12b0] sm:$0xff]
    %v675 = vld [vmem:[#allocation5 + $0x12b8] sm:$0xff]
    %v676 = vld [vmem:[#allocation5 + $0x12c0] sm:$0xff]
    %v677 = vld [vmem:[#allocation5 + $0x12c8] sm:$0xff]
    %v678 = vld [vmem:[#allocation5 + $0x12d0] sm:$0xff]
    %v679 = vld [vmem:[#allocation5 + $0x12d8] sm:$0xff]
    %v680 = vld [vmem:[#allocation5 + $0x12e0] sm:$0xff]
    %v681 = vld [vmem:[#allocation5 + $0x12e8] sm:$0xff]
    %v682 = vld [vmem:[#allocation5 + $0x12f0] sm:$0xff]
    %v683 = vld [vmem:[#allocation5 + $0x12f8] sm:$0xff]
    %v684 = vld [vmem:[#allocation5 + $0x1300] sm:$0xff]
    %v685 = vld [vmem:[#allocation5 + $0x1308] sm:$0xff]
    %v686 = vld [vmem:[#allocation5 + $0x1310] sm:$0xff]
    %v687 = vld [vmem:[#allocation5 + $0x1318] sm:$0xff]
    %v688 = vld [vmem:[#allocation5 + $0x1320] sm:$0xff]
    %v689 = vld [vmem:[#allocation5 + $0x1328] sm:$0xff]
    %v690 = vld [vmem:[#allocation5 + $0x1330] sm:$0xff]
    %v691 = vld [vmem:[#allocation5 + $0x1338] sm:$0xff]
    %v692 = vld [vmem:[#allocation5 + $0x1340] sm:$0xff]
    %v693 = vld [vmem:[#allocation5 + $0x1348] sm:$0xff]
    %v694 = vld [vmem:[#allocation5 + $0x1350] sm:$0xff]
    %v695 = vld [vmem:[#allocation5 + $0x1358] sm:$0xff]
    %v696 = vld [vmem:[#allocation5 + $0x1360] sm:$0xff]
    %v697 = vld [vmem:[#allocation5 + $0x1368] sm:$0xff]
    %v698 = vld [vmem:[#allocation5 + $0x1370] sm:$0xff]
    %v699 = vld [vmem:[#allocation5 + $0x1378] sm:$0xff]
    %v700 = vld [vmem:[#allocation5 + $0x1380] sm:$0xff]
    %v701 = vld [vmem:[#allocation5 + $0x1388] sm:$0xff]
    %v702 = vld [vmem:[#allocation5 + $0x1390] sm:$0xff]
    %v703 = vld [vmem:[#allocation5 + $0x1398] sm:$0xff]
    %v704 = vld [vmem:[#allocation5 + $0x13a0] sm:$0xff]
    %v705 = vld [vmem:[#allocation5 + $0x13a8] sm:$0xff]
    %v706 = vld [vmem:[#allocation5 + $0x13b0] sm:$0xff]
    %v707 = vld [vmem:[#allocation5 + $0x13b8] sm:$0xff]
    %v708 = vld [vmem:[#allocation5 + $0x13c0] sm:$0xff]
    %v709 = vld [vmem:[#allocation5 + $0x13c8] sm:$0xff]
    %v710 = vld [vmem:[#allocation5 + $0x13d0] sm:$0xff]
    %v711 = vld [vmem:[#allocation5 + $0x13d8] sm:$0xff]
    %v712 = vld [vmem:[#allocation5 + $0x13e0] sm:$0xff]
    %v713 = vld [vmem:[#allocation5 + $0x13e8] sm:$0xff]
    %v714 = vld [vmem:[#allocation5 + $0x13f0] sm:$0xff]
    %v715 = vld [vmem:[#allocation5 + $0x13f8] sm:$0xff]
    %v716 = vld [vmem:[#allocation5 + $0x1400] sm:$0xff]
    %v717 = vld [vmem:[#allocation5 + $0x1408] sm:$0xff]
    %v718 = vld [vmem:[#allocation5 + $0x1410] sm:$0xff]
    %v719 = vld [vmem:[#allocation5 + $0x1418] sm:$0xff]
    %v720 = vld [vmem:[#allocation5 + $0x1420] sm:$0xff]
    %v721 = vld [vmem:[#allocation5 + $0x1428] sm:$0xff]
    %v722 = vld [vmem:[#allocation5 + $0x1430] sm:$0xff]
    %v723 = vld [vmem:[#allocation5 + $0x1438] sm:$0xff]
    %v724 = vld [vmem:[#allocation5 + $0x1440] sm:$0xff]
    %v725 = vld [vmem:[#allocation5 + $0x1448] sm:$0xff]
    %v726 = vld [vmem:[#allocation5 + $0x1450] sm:$0xff]
    %v727 = vld [vmem:[#allocation5 + $0x1458] sm:$0xff]
    %v728 = vld [vmem:[#allocation5 + $0x1460] sm:$0xff]
    %v729 = vld [vmem:[#allocation5 + $0x1468] sm:$0xff]
    %v730 = vld [vmem:[#allocation5 + $0x1470] sm:$0xff]
    %v731 = vld [vmem:[#allocation5 + $0x1478] sm:$0xff]
    %v732 = vld [vmem:[#allocation5 + $0x1480] sm:$0xff]
    %v733 = vld [vmem:[#allocation5 + $0x1488] sm:$0xff]
    %v734 = vld [vmem:[#allocation5 + $0x1490] sm:$0xff]
    %v735 = vld [vmem:[#allocation5 + $0x1498] sm:$0xff]
    %v736 = vld [vmem:[#allocation5 + $0x14a0] sm:$0xff]
    %v737 = vld [vmem:[#allocation5 + $0x14a8] sm:$0xff]
    %v738 = vld [vmem:[#allocation5 + $0x14b0] sm:$0xff]
    %v739 = vld [vmem:[#allocation5 + $0x14b8] sm:$0xff]
    %v740 = vld [vmem:[#allocation5 + $0x14c0] sm:$0xff]
    %v741 = vld [vmem:[#allocation5 + $0x14c8] sm:$0xff]
    %v742 = vld [vmem:[#allocation5 + $0x14d0] sm:$0xff]
    %v743 = vld [vmem:[#allocation5 + $0x14d8] sm:$0xff]
    %v744 = vld [vmem:[#allocation5 + $0x14e0] sm:$0xff]
    %v745 = vld [vmem:[#allocation5 + $0x14e8] sm:$0xff]
    %v746 = vld [vmem:[#allocation5 + $0x14f0] sm:$0xff]
    %v747 = vld [vmem:[#allocation5 + $0x14f8] sm:$0xff]
    %v748 = vld [vmem:[#allocation5 + $0x1500] sm:$0xff]
    %v749 = vld [vmem:[#allocation5 + $0x1508] sm:$0xff]
    %v750 = vld [vmem:[#allocation5 + $0x1510] sm:$0xff]
    %v751 = vld [vmem:[#allocation5 + $0x1518] sm:$0xff]
    %v752 = vld [vmem:[#allocation5 + $0x1520] sm:$0xff]
    %v753 = vld [vmem:[#allocation5 + $0x1528] sm:$0xff]
    %v754 = vld [vmem:[#allocation5 + $0x1530] sm:$0xff]
    %v755 = vld [vmem:[#allocation5 + $0x1538] sm:$0xff]
    %v756 = vld [vmem:[#allocation5 + $0x1540] sm:$0xff]
    %v757 = vld [vmem:[#allocation5 + $0x1548] sm:$0xff]
    %v758 = vld [vmem:[#allocation5 + $0x1550] sm:$0xff]
    %v759 = vld [vmem:[#allocation5 + $0x1558] sm:$0xff]
    %v760 = vld [vmem:[#allocation5 + $0x1560] sm:$0xff]
    %v761 = vld [vmem:[#allocation5 + $0x1568] sm:$0xff]
    %v762 = vld [vmem:[#allocation5 + $0x1570] sm:$0xff]
    %v763 = vld [vmem:[#allocation5 + $0x1578] sm:$0xff]
    %v764 = vld [vmem:[#allocation5 + $0x1580] sm:$0xff]
    %v765 = vld [vmem:[#allocation5 + $0x1588] sm:$0xff]
    %v766 = vld [vmem:[#allocation5 + $0x1590] sm:$0xff]
    %v767 = vld [vmem:[#allocation5 + $0x1598] sm:$0xff]
    %v768 = vld [vmem:[#allocation5 + $0x15a0] sm:$0xff]
    %v769 = vld [vmem:[#allocation5 + $0x15a8] sm:$0xff]
    %v770 = vld [vmem:[#allocation5 + $0x15b0] sm:$0xff]
    %v771 = vld [vmem:[#allocation5 + $0x15b8] sm:$0xff]
    %v772 = vld [vmem:[#allocation5 + $0x15c0] sm:$0xff]
    %v773 = vld [vmem:[#allocation5 + $0x15c8] sm:$0xff]
    %v774 = vld [vmem:[#allocation5 + $0x15d0] sm:$0xff]
    %v775 = vld [vmem:[#allocation5 + $0x15d8] sm:$0xff]
    %v776 = vld [vmem:[#allocation5 + $0x15e0] sm:$0xff]
    %v777 = vld [vmem:[#allocation5 + $0x15e8] sm:$0xff]
    %v778 = vld [vmem:[#allocation5 + $0x15f0] sm:$0xff]
    %v779 = vld [vmem:[#allocation5 + $0x15f8] sm:$0xff]
    %v780 = vld [vmem:[#allocation5 + $0x1600] sm:$0xff]
    %v781 = vld [vmem:[#allocation5 + $0x1608] sm:$0xff]
    %v782 = vld [vmem:[#allocation5 + $0x1610] sm:$0xff]
    %v783 = vld [vmem:[#allocation5 + $0x1618] sm:$0xff]
    %v784 = vld [vmem:[#allocation5 + $0x1620] sm:$0xff]
    %v785 = vld [vmem:[#allocation5 + $0x1628] sm:$0xff]
    %v786 = vld [vmem:[#allocation5 + $0x1630] sm:$0xff]
    %v787 = vld [vmem:[#allocation5 + $0x1638] sm:$0xff]
    %v788 = vld [vmem:[#allocation5 + $0x1640] sm:$0xff]
    %v789 = vld [vmem:[#allocation5 + $0x1648] sm:$0xff]
    %v790 = vld [vmem:[#allocation5 + $0x1650] sm:$0xff]
    %v791 = vld [vmem:[#allocation5 + $0x1658] sm:$0xff]
    %v792 = vld [vmem:[#allocation5 + $0x1660] sm:$0xff]
    %v793 = vld [vmem:[#allocation5 + $0x1668] sm:$0xff]
    %v794 = vld [vmem:[#allocation5 + $0x1670] sm:$0xff]
    %v795 = vld [vmem:[#allocation5 + $0x1678] sm:$0xff]
    %v796 = vld [vmem:[#allocation5 + $0x1680] sm:$0xff]
    %v797 = vld [vmem:[#allocation5 + $0x1688] sm:$0xff]
    %v798 = vld [vmem:[#allocation5 + $0x1690] sm:$0xff]
    %v799 = vld [vmem:[#allocation5 + $0x1698] sm:$0xff]
    %v800 = vld [vmem:[#allocation5 + $0x16a0] sm:$0xff]
    %v801 = vld [vmem:[#allocation5 + $0x16a8] sm:$0xff]
    %v802 = vld [vmem:[#allocation5 + $0x16b0] sm:$0xff]
    %v803 = vld [vmem:[#allocation5 + $0x16b8] sm:$0xff]
    %v804 = vld [vmem:[#allocation5 + $0x16c0] sm:$0xff]
    %v805 = vld [vmem:[#allocation5 + $0x16c8] sm:$0xff]
    %v806 = vld [vmem:[#allocation5 + $0x16d0] sm:$0xff]
    %v807 = vld [vmem:[#allocation5 + $0x16d8] sm:$0xff]
    %v808 = vld [vmem:[#allocation5 + $0x16e0] sm:$0xff]
    %v809 = vld [vmem:[#allocation5 + $0x16e8] sm:$0xff]
    %v810 = vld [vmem:[#allocation5 + $0x16f0] sm:$0xff]
    %v811 = vld [vmem:[#allocation5 + $0x16f8] sm:$0xff]
    %v812 = vld [vmem:[#allocation5 + $0x1700] sm:$0xff]
    %v813 = vld [vmem:[#allocation5 + $0x1708] sm:$0xff]
    %v814 = vld [vmem:[#allocation5 + $0x1710] sm:$0xff]
    %v815 = vld [vmem:[#allocation5 + $0x1718] sm:$0xff]
    %v816 = vld [vmem:[#allocation5 + $0x1720] sm:$0xff]
    %v817 = vld [vmem:[#allocation5 + $0x1728] sm:$0xff]
    %v818 = vld [vmem:[#allocation5 + $0x1730] sm:$0xff]
    %v819 = vld [vmem:[#allocation5 + $0x1738] sm:$0xff]
    %v820 = vld [vmem:[#allocation5 + $0x1740] sm:$0xff]
    %v821 = vld [vmem:[#allocation5 + $0x1748] sm:$0xff]
    %v822 = vld [vmem:[#allocation5 + $0x1750] sm:$0xff]
    %v823 = vld [vmem:[#allocation5 + $0x1758] sm:$0xff]
    %v824 = vld [vmem:[#allocation5 + $0x1760] sm:$0xff]
    %v825 = vld [vmem:[#allocation5 + $0x1768] sm:$0xff]
    %v826 = vld [vmem:[#allocation5 + $0x1770] sm:$0xff]
    %v827 = vld [vmem:[#allocation5 + $0x1778] sm:$0xff]
    %v828 = vld [vmem:[#allocation5 + $0x1780] sm:$0xff]
    %v829 = vld [vmem:[#allocation5 + $0x1788] sm:$0xff]
    %v830 = vld [vmem:[#allocation5 + $0x1790] sm:$0xff]
    %v831 = vld [vmem:[#allocation5 + $0x1798] sm:$0xff]
    %v832 = vld [vmem:[#allocation5 + $0x17a0] sm:$0xff]
    %v833 = vld [vmem:[#allocation5 + $0x17a8] sm:$0xff]
    %v834 = vld [vmem:[#allocation5 + $0x17b0] sm:$0xff]
    %v835 = vld [vmem:[#allocation5 + $0x17b8] sm:$0xff]
    %v836 = vld [vmem:[#allocation5 + $0x17c0] sm:$0xff]
    %v837 = vld [vmem:[#allocation5 + $0x17c8] sm:$0xff]
    %v838 = vld [vmem:[#allocation5 + $0x17d0] sm:$0xff]
    %v839 = vld [vmem:[#allocation5 + $0x17d8] sm:$0xff]
    %v840 = vld [vmem:[#allocation5 + $0x17e0] sm:$0xff]
    %v841 = vld [vmem:[#allocation5 + $0x17e8] sm:$0xff]
    %v842 = vld [vmem:[#allocation5 + $0x17f0] sm:$0xff]
    %v843 = vld [vmem:[#allocation5 + $0x17f8] sm:$0xff]
    %v844 = vld [vmem:[#allocation7] sm:$0x1]
    %v846 = vlaneseq
    %v847 = vshrl.u32 %v846, 7
    %v848 = vsub.s32 0, %v847
    %v849 = vrot.slane %v844, %v848
    %v875 = vcombine.high %v52, %v52
    %v876 = vcombine.high %v53, %v53
    %v877 = vcombine.high %v54, %v54
    %v878 = vcombine.high %v55, %v55
    %v879 = vcombine.high %v56, %v56
    %v880 = vcombine.high %v57, %v57
    %v881 = vcombine.high %v58, %v58
    %v882 = vcombine.high %v59, %v59
    %v883 = vcombine.high %v60, %v60
    %v884 = vcombine.high %v61, %v61
    %v885 = vcombine.high %v62, %v62
    %v886 = vcombine.high %v63, %v63
    %v887 = vcombine.high %v64, %v64
    %v888 = vcombine.high %v65, %v65
    %v889 = vcombine.high %v66, %v66
    %v890 = vcombine.high %v67, %v67
    %v891 = vcombine.high %v68, %v68
    %v892 = vcombine.high %v69, %v69
    %v893 = vcombine.high %v70, %v70
    %v894 = vcombine.high %v71, %v71
    %v895 = vcombine.high %v72, %v72
    %v896 = vcombine.high %v73, %v73
    %v897 = vcombine.high %v74, %v74
    %v898 = vcombine.high %v75, %v75
    %923 = vmatprep.subr.mxu0 0.0
    %924 = vmatpush1.msra.mxu0 %v76
    %925 = vmatprep.subr.mxu0 0.0
    %926 = vmatpush1.msra.mxu0 %v77
    %927 = vmatprep.subr.mxu0 0.0
    %928 = vmatpush1.msra.mxu0 %v78
    %929 = vmatprep.subr.mxu0 0.0
    %930 = vmatpush1.msra.mxu0 %v79
    %931 = vmatprep.subr.mxu0 0.0
    %932 = vmatpush1.msra.mxu0 %v80
    %933 = vmatprep.subr.mxu0 0.0
    %934 = vmatpush1.msra.mxu0 %v81
    %935 = vmatprep.subr.mxu0 0.0
    %936 = vmatpush1.msra.mxu0 %v82
    %937 = vmatprep.subr.mxu0 0.0
    %938 = vmatpush1.msra.mxu0 %v83
    %939 = vmatprep.subr.mxu0 0.0
    %940 = vmatpush1.msra.mxu0 %v84
    %941 = vmatprep.subr.mxu0 0.0
    %942 = vmatpush1.msra.mxu0 %v85
    %943 = vmatprep.subr.mxu0 0.0
    %944 = vmatpush1.msra.mxu0 %v86
    %945 = vmatprep.subr.mxu0 0.0
    %946 = vmatpush1.msra.mxu0 %v87
    %947 = vmatprep.subr.mxu0 0.0
    %948 = vmatpush1.msra.mxu0 %v88
    %949 = vmatprep.subr.mxu0 0.0
    %950 = vmatpush1.msra.mxu0 %v89
    %951 = vmatprep.subr.mxu0 0.0
    %952 = vmatpush1.msra.mxu0 %v90
    %953 = vmatprep.subr.mxu0 0.0
    %954 = vmatpush1.msra.mxu0 %v91
    %955 = vmatprep.subr.mxu0 0.0
    %956 = vmatpush1.msra.mxu0 %v92
    %957 = vmatprep.subr.mxu0 0.0
    %958 = vmatpush1.msra.mxu0 %v93
    %959 = vmatprep.subr.mxu0 0.0
    %960 = vmatpush1.msra.mxu0 %v94
    %961 = vmatprep.subr.mxu0 0.0
    %962 = vmatpush1.msra.mxu0 %v95
    %963 = vmatprep.subr.mxu0 0.0
    %964 = vmatpush1.msra.mxu0 %v96
    %965 = vmatprep.subr.mxu0 0.0
    %966 = vmatpush1.msra.mxu0 %v97
    %967 = vmatprep.subr.mxu0 0.0
    %968 = vmatpush1.msra.mxu0 %v98
    %969 = vmatprep.subr.mxu0 0.0
    %970 = vmatpush1.msra.mxu0 %v99
    %971 = vmatprep.subr.mxu0 0.0
    %972 = vmatpush1.msra.mxu0 %v100
    %973 = vmatprep.subr.mxu0 0.0
    %974 = vmatpush1.msra.mxu0 %v101
    %975 = vmatprep.subr.mxu0 0.0
    %976 = vmatpush1.msra.mxu0 %v102
    %977 = vmatprep.subr.mxu0 0.0
    %978 = vmatpush1.msra.mxu0 %v103
    %979 = vmatprep.subr.mxu0 0.0
    %980 = vmatpush1.msra.mxu0 %v104
    %981 = vmatprep.subr.mxu0 0.0
    %982 = vmatpush1.msra.mxu0 %v105
    %983 = vmatprep.subr.mxu0 0.0
    %984 = vmatpush1.msra.mxu0 %v106
    %985 = vmatprep.subr.mxu0 0.0
    %986 = vmatpush1.msra.mxu0 %v107
    %987 = vmatprep.mubr.f32.mxu0 %v875
    %988 = vmatmul.mubr.f32.gmra.mrb[0].mxu0 %v52
    %v989 = vpop.f32.mrb[0].mxu0
    %v990 = vadd.f32 %v849, %v989
    %v991 = vpop.f32.mrb[0].mxu0
    %992 = vdwg.mxu0
    %993 = vmatprep.subr.mxu0 0.0
    %994 = vmatpush1.msra.mxu0 %v108
    %995 = vmatprep.subr.mxu0 0.0
    %996 = vmatpush1.msra.mxu0 %v109
    %997 = vmatprep.subr.mxu0 0.0
    %998 = vmatpush1.msra.mxu0 %v110
    %999 = vmatprep.subr.mxu0 0.0
    %1000 = vmatpush1.msra.mxu0 %v111
    %1001 = vmatprep.subr.mxu0 0.0
    %1002 = vmatpush1.msra.mxu0 %v112
    %1003 = vmatprep.subr.mxu0 0.0
    %1004 = vmatpush1.msra.mxu0 %v113
    %1005 = vmatprep.subr.mxu0 0.0
    %1006 = vmatpush1.msra.mxu0 %v114
    %1007 = vmatprep.subr.mxu0 0.0
    %1008 = vmatpush1.msra.mxu0 %v115
    %1009 = vmatprep.subr.mxu0 0.0
    %1010 = vmatpush1.msra.mxu0 %v116
    %1011 = vmatprep.subr.mxu0 0.0
    %1012 = vmatpush1.msra.mxu0 %v117
    %1013 = vmatprep.subr.mxu0 0.0
    %1014 = vmatpush1.msra.mxu0 %v118
    %1015 = vmatprep.subr.mxu0 0.0
    %1016 = vmatpush1.msra.mxu0 %v119
    %1017 = vmatprep.subr.mxu0 0.0
    %1018 = vmatpush1.msra.mxu0 %v120
    %1019 = vmatprep.subr.mxu0 0.0
    %1020 = vmatpush1.msra.mxu0 %v121
    %1021 = vmatprep.subr.mxu0 0.0
    %1022 = vmatpush1.msra.mxu0 %v122
    %1023 = vmatprep.subr.mxu0 0.0
    %1024 = vmatpush1.msra.mxu0 %v123
    %1025 = vmatprep.subr.mxu0 0.0
    %1026 = vmatpush1.msra.mxu0 %v124
    %1027 = vmatprep.subr.mxu0 0.0
    %1028 = vmatpush1.msra.mxu0 %v125
    %1029 = vmatprep.subr.mxu0 0.0
    %1030 = vmatpush1.msra.mxu0 %v126
    %1031 = vmatprep.subr.mxu0 0.0
    %1032 = vmatpush1.msra.mxu0 %v127
    %1033 = vmatprep.subr.mxu0 0.0
    %1034 = vmatpush1.msra.mxu0 %v128
    %1035 = vmatprep.subr.mxu0 0.0
    %1036 = vmatpush1.msra.mxu0 %v129
    %1037 = vmatprep.subr.mxu0 0.0
    %1038 = vmatpush1.msra.mxu0 %v130
    %1039 = vmatprep.subr.mxu0 0.0
    %1040 = vmatpush1.msra.mxu0 %v131
    %1041 = vmatprep.subr.mxu0 0.0
    %1042 = vmatpush1.msra.mxu0 %v132
    %1043 = vmatprep.subr.mxu0 0.0
    %1044 = vmatpush1.msra.mxu0 %v133
    %1045 = vmatprep.subr.mxu0 0.0
    %1046 = vmatpush1.msra.mxu0 %v134
    %1047 = vmatprep.subr.mxu0 0.0
    %1048 = vmatpush1.msra.mxu0 %v135
    %1049 = vmatprep.subr.mxu0 0.0
    %1050 = vmatpush1.msra.mxu0 %v136
    %1051 = vmatprep.subr.mxu0 0.0
    %1052 = vmatpush1.msra.mxu0 %v137
    %1053 = vmatprep.subr.mxu0 0.0
    %1054 = vmatpush1.msra.mxu0 %v138
    %1055 = vmatprep.subr.mxu0 0.0
    %1056 = vmatpush1.msra.mxu0 %v139
    %1057 = vmatprep.mubr.f32.mxu0 %v876
    %1058 = vmatmul.mubr.f32.gmra.mrb[0].mxu0 %v53
    %v1059 = vpop.f32.mrb[0].mxu0
    %v1060 = vadd.f32 %v990, %v1059
    %v1061 = vpop.f32.mrb[0].mxu0
    %1062 = vdwg.mxu0
    %1063 = vmatprep.subr.mxu0 0.0
    %1064 = vmatpush1.msra.mxu0 %v140
    %1065 = vmatprep.subr.mxu0 0.0
    %1066 = vmatpush1.msra.mxu0 %v141
    %1067 = vmatprep.subr.mxu0 0.0
    %1068 = vmatpush1.msra.mxu0 %v142
    %1069 = vmatprep.subr.mxu0 0.0
    %1070 = vmatpush1.msra.mxu0 %v143
    %1071 = vmatprep.subr.mxu0 0.0
    %1072 = vmatpush1.msra.mxu0 %v144
    %1073 = vmatprep.subr.mxu0 0.0
    %1074 = vmatpush1.msra.mxu0 %v145
    %1075 = vmatprep.subr.mxu0 0.0
    %1076 = vmatpush1.msra.mxu0 %v146
    %1077 = vmatprep.subr.mxu0 0.0
    %1078 = vmatpush1.msra.mxu0 %v147
    %1079 = vmatprep.subr.mxu0 0.0
    %1080 = vmatpush1.msra.mxu0 %v148
    %1081 = vmatprep.subr.mxu0 0.0
    %1082 = vmatpush1.msra.mxu0 %v149
    %1083 = vmatprep.subr.mxu0 0.0
    %1084 = vmatpush1.msra.mxu0 %v150
    %1085 = vmatprep.subr.mxu0 0.0
    %1086 = vmatpush1.msra.mxu0 %v151
    %1087 = vmatprep.subr.mxu0 0.0
    %1088 = vmatpush1.msra.mxu0 %v152
    %1089 = vmatprep.subr.mxu0 0.0
    %1090 = vmatpush1.msra.mxu0 %v153
    %1091 = vmatprep.subr.mxu0 0.0
    %1092 = vmatpush1.msra.mxu0 %v154
    %1093 = vmatprep.subr.mxu0 0.0
    %1094 = vmatpush1.msra.mxu0 %v155
    %1095 = vmatprep.subr.mxu0 0.0
    %1096 = vmatpush1.msra.mxu0 %v156
    %1097 = vmatprep.subr.mxu0 0.0
    %1098 = vmatpush1.msra.mxu0 %v157
    %1099 = vmatprep.subr.mxu0 0.0
    %1100 = vmatpush1.msra.mxu0 %v158
    %1101 = vmatprep.subr.mxu0 0.0
    %1102 = vmatpush1.msra.mxu0 %v159
    %1103 = vmatprep.subr.mxu0 0.0
    %1104 = vmatpush1.msra.mxu0 %v160
    %1105 = vmatprep.subr.mxu0 0.0
    %1106 = vmatpush1.msra.mxu0 %v161
    %1107 = vmatprep.subr.mxu0 0.0
    %1108 = vmatpush1.msra.mxu0 %v162
    %1109 = vmatprep.subr.mxu0 0.0
    %1110 = vmatpush1.msra.mxu0 %v163
    %1111 = vmatprep.subr.mxu0 0.0
    %1112 = vmatpush1.msra.mxu0 %v164
    %1113 = vmatprep.subr.mxu0 0.0
    %1114 = vmatpush1.msra.mxu0 %v165
    %1115 = vmatprep.subr.mxu0 0.0
    %1116 = vmatpush1.msra.mxu0 %v166
    %1117 = vmatprep.subr.mxu0 0.0
    %1118 = vmatpush1.msra.mxu0 %v167
    %1119 = vmatprep.subr.mxu0 0.0
    %1120 = vmatpush1.msra.mxu0 %v168
    %1121 = vmatprep.subr.mxu0 0.0
    %1122 = vmatpush1.msra.mxu0 %v169
    %1123 = vmatprep.subr.mxu0 0.0
    %1124 = vmatpush1.msra.mxu0 %v170
    %1125 = vmatprep.subr.mxu0 0.0
    %1126 = vmatpush1.msra.mxu0 %v171
    %1127 = vmatprep.mubr.f32.mxu0 %v877
    %1128 = vmatmul.mubr.f32.gmra.mrb[0].mxu0 %v54
    %v1129 = vpop.f32.mrb[0].mxu0
    %v1130 = vadd.f32 %v1060, %v1129
    %v1131 = vpop.f32.mrb[0].mxu0
    %1132 = vdwg.mxu0
    %1133 = vmatprep.subr.mxu0 0.0
    %1134 = vmatpush1.msra.mxu0 %v172
    %1135 = vmatprep.subr.mxu0 0.0
    %1136 = vmatpush1.msra.mxu0 %v173
    %1137 = vmatprep.subr.mxu0 0.0
    %1138 = vmatpush1.msra.mxu0 %v174
    %1139 = vmatprep.subr.mxu0 0.0
    %1140 = vmatpush1.msra.mxu0 %v175
    %1141 = vmatprep.subr.mxu0 0.0
    %1142 = vmatpush1.msra.mxu0 %v176
    %1143 = vmatprep.subr.mxu0 0.0
    %1144 = vmatpush1.msra.mxu0 %v177
    %1145 = vmatprep.subr.mxu0 0.0
    %1146 = vmatpush1.msra.mxu0 %v178
    %1147 = vmatprep.subr.mxu0 0.0
    %1148 = vmatpush1.msra.mxu0 %v179
    %1149 = vmatprep.subr.mxu0 0.0
    %1150 = vmatpush1.msra.mxu0 %v180
    %1151 = vmatprep.subr.mxu0 0.0
    %1152 = vmatpush1.msra.mxu0 %v181
    %1153 = vmatprep.subr.mxu0 0.0
    %1154 = vmatpush1.msra.mxu0 %v182
    %1155 = vmatprep.subr.mxu0 0.0
    %1156 = vmatpush1.msra.mxu0 %v183
    %1157 = vmatprep.subr.mxu0 0.0
    %1158 = vmatpush1.msra.mxu0 %v184
    %1159 = vmatprep.subr.mxu0 0.0
    %1160 = vmatpush1.msra.mxu0 %v185
    %1161 = vmatprep.subr.mxu0 0.0
    %1162 = vmatpush1.msra.mxu0 %v186
    %1163 = vmatprep.subr.mxu0 0.0
    %1164 = vmatpush1.msra.mxu0 %v187
    %1165 = vmatprep.subr.mxu0 0.0
    %1166 = vmatpush1.msra.mxu0 %v188
    %1167 = vmatprep.subr.mxu0 0.0
    %1168 = vmatpush1.msra.mxu0 %v189
    %1169 = vmatprep.subr.mxu0 0.0
    %1170 = vmatpush1.msra.mxu0 %v190
    %1171 = vmatprep.subr.mxu0 0.0
    %1172 = vmatpush1.msra.mxu0 %v191
    %1173 = vmatprep.subr.mxu0 0.0
    %1174 = vmatpush1.msra.mxu0 %v192
    %1175 = vmatprep.subr.mxu0 0.0
    %1176 = vmatpush1.msra.mxu0 %v193
    %1177 = vmatprep.subr.mxu0 0.0
    %1178 = vmatpush1.msra.mxu0 %v194
    %1179 = vmatprep.subr.mxu0 0.0
    %1180 = vmatpush1.msra.mxu0 %v195
    %1181 = vmatprep.subr.mxu0 0.0
    %1182 = vmatpush1.msra.mxu0 %v196
    %1183 = vmatprep.subr.mxu0 0.0
    %1184 = vmatpush1.msra.mxu0 %v197
    %1185 = vmatprep.subr.mxu0 0.0
    %1186 = vmatpush1.msra.mxu0 %v198
    %1187 = vmatprep.subr.mxu0 0.0
    %1188 = vmatpush1.msra.mxu0 %v199
    %1189 = vmatprep.subr.mxu0 0.0
    %1190 = vmatpush1.msra.mxu0 %v200
    %1191 = vmatprep.subr.mxu0 0.0
    %1192 = vmatpush1.msra.mxu0 %v201
    %1193 = vmatprep.subr.mxu0 0.0
    %1194 = vmatpush1.msra.mxu0 %v202
    %1195 = vmatprep.subr.mxu0 0.0
    %1196 = vmatpush1.msra.mxu0 %v203
    %1197 = vmatprep.mubr.f32.mxu0 %v878
    %1198 = vmatmul.mubr.f32.gmra.mrb[0].mxu0 %v55
    %v1199 = vpop.f32.mrb[0].mxu0
    %v1200 = vadd.f32 %v1130, %v1199
    %v1201 = vpop.f32.mrb[0].mxu0
    %1202 = vdwg.mxu0
    %1203 = vmatprep.subr.mxu0 0.0
    %1204 = vmatpush1.msra.mxu0 %v204
    %1205 = vmatprep.subr.mxu0 0.0
    %1206 = vmatpush1.msra.mxu0 %v205
    %1207 = vmatprep.subr.mxu0 0.0
    %1208 = vmatpush1.msra.mxu0 %v206
    %1209 = vmatprep.subr.mxu0 0.0
    %1210 = vmatpush1.msra.mxu0 %v207
    %1211 = vmatprep.subr.mxu0 0.0
    %1212 = vmatpush1.msra.mxu0 %v208
    %1213 = vmatprep.subr.mxu0 0.0
    %1214 = vmatpush1.msra.mxu0 %v209
    %1215 = vmatprep.subr.mxu0 0.0
    %1216 = vmatpush1.msra.mxu0 %v210
    %1217 = vmatprep.subr.mxu0 0.0
    %1218 = vmatpush1.msra.mxu0 %v211
    %1219 = vmatprep.subr.mxu0 0.0
    %1220 = vmatpush1.msra.mxu0 %v212
    %1221 = vmatprep.subr.mxu0 0.0
    %1222 = vmatpush1.msra.mxu0 %v213
    %1223 = vmatprep.subr.mxu0 0.0
    %1224 = vmatpush1.msra.mxu0 %v214
    %1225 = vmatprep.subr.mxu0 0.0
    %1226 = vmatpush1.msra.mxu0 %v215
    %1227 = vmatprep.subr.mxu0 0.0
    %1228 = vmatpush1.msra.mxu0 %v216
    %1229 = vmatprep.subr.mxu0 0.0
    %1230 = vmatpush1.msra.mxu0 %v217
    %1231 = vmatprep.subr.mxu0 0.0
    %1232 = vmatpush1.msra.mxu0 %v218
    %1233 = vmatprep.subr.mxu0 0.0
    %1234 = vmatpush1.msra.mxu0 %v219
    %1235 = vmatprep.subr.mxu0 0.0
    %1236 = vmatpush1.msra.mxu0 %v220
    %1237 = vmatprep.subr.mxu0 0.0
    %1238 = vmatpush1.msra.mxu0 %v221
    %1239 = vmatprep.subr.mxu0 0.0
    %1240 = vmatpush1.msra.mxu0 %v222
    %1241 = vmatprep.subr.mxu0 0.0
    %1242 = vmatpush1.msra.mxu0 %v223
    %1243 = vmatprep.subr.mxu0 0.0
    %1244 = vmatpush1.msra.mxu0 %v224
    %1245 = vmatprep.subr.mxu0 0.0
    %1246 = vmatpush1.msra.mxu0 %v225
    %1247 = vmatprep.subr.mxu0 0.0
    %1248 = vmatpush1.msra.mxu0 %v226
    %1249 = vmatprep.subr.mxu0 0.0
    %1250 = vmatpush1.msra.mxu0 %v227
    %1251 = vmatprep.subr.mxu0 0.0
    %1252 = vmatpush1.msra.mxu0 %v228
    %1253 = vmatprep.subr.mxu0 0.0
    %1254 = vmatpush1.msra.mxu0 %v229
    %1255 = vmatprep.subr.mxu0 0.0
    %1256 = vmatpush1.msra.mxu0 %v230
    %1257 = vmatprep.subr.mxu0 0.0
    %1258 = vmatpush1.msra.mxu0 %v231
    %1259 = vmatprep.subr.mxu0 0.0
    %1260 = vmatpush1.msra.mxu0 %v232
    %1261 = vmatprep.subr.mxu0 0.0
    %1262 = vmatpush1.msra.mxu0 %v233
    %1263 = vmatprep.subr.mxu0 0.0
    %1264 = vmatpush1.msra.mxu0 %v234
    %1265 = vmatprep.subr.mxu0 0.0
    %1266 = vmatpush1.msra.mxu0 %v235
    %1267 = vmatprep.mubr.f32.mxu0 %v879
    %1268 = vmatmul.mubr.f32.gmra.mrb[0].mxu0 %v56
    %v1269 = vpop.f32.mrb[0].mxu0
    %v1270 = vadd.f32 %v1200, %v1269
    %v1271 = vpop.f32.mrb[0].mxu0
    %1272 = vdwg.mxu0
    %1273 = vmatprep.subr.mxu0 0.0
    %1274 = vmatpush1.msra.mxu0 %v236
    %1275 = vmatprep.subr.mxu0 0.0
    %1276 = vmatpush1.msra.mxu0 %v237
    %1277 = vmatprep.subr.mxu0 0.0
    %1278 = vmatpush1.msra.mxu0 %v238
    %1279 = vmatprep.subr.mxu0 0.0
    %1280 = vmatpush1.msra.mxu0 %v239
    %1281 = vmatprep.subr.mxu0 0.0
    %1282 = vmatpush1.msra.mxu0 %v240
    %1283 = vmatprep.subr.mxu0 0.0
    %1284 = vmatpush1.msra.mxu0 %v241
    %1285 = vmatprep.subr.mxu0 0.0
    %1286 = vmatpush1.msra.mxu0 %v242
    %1287 = vmatprep.subr.mxu0 0.0
    %1288 = vmatpush1.msra.mxu0 %v243
    %1289 = vmatprep.subr.mxu0 0.0
    %1290 = vmatpush1.msra.mxu0 %v244
    %1291 = vmatprep.subr.mxu0 0.0
    %1292 = vmatpush1.msra.mxu0 %v245
    %1293 = vmatprep.subr.mxu0 0.0
    %1294 = vmatpush1.msra.mxu0 %v246
    %1295 = vmatprep.subr.mxu0 0.0
    %1296 = vmatpush1.msra.mxu0 %v247
    %1297 = vmatprep.subr.mxu0 0.0
    %1298 = vmatpush1.msra.mxu0 %v248
    %1299 = vmatprep.subr.mxu0 0.0
    %1300 = vmatpush1.msra.mxu0 %v249
    %1301 = vmatprep.subr.mxu0 0.0
    %1302 = vmatpush1.msra.mxu0 %v250
    %1303 = vmatprep.subr.mxu0 0.0
    %1304 = vmatpush1.msra.mxu0 %v251
    %1305 = vmatprep.subr.mxu0 0.0
    %1306 = vmatpush1.msra.mxu0 %v252
    %1307 = vmatprep.subr.mxu0 0.0
    %1308 = vmatpush1.msra.mxu0 %v253
    %1309 = vmatprep.subr.mxu0 0.0
    %1310 = vmatpush1.msra.mxu0 %v254
    %1311 = vmatprep.subr.mxu0 0.0
    %1312 = vmatpush1.msra.mxu0 %v255
    %1313 = vmatprep.subr.mxu0 0.0
    %1314 = vmatpush1.msra.mxu0 %v256
    %1315 = vmatprep.subr.mxu0 0.0
    %1316 = vmatpush1.msra.mxu0 %v257
    %1317 = vmatprep.subr.mxu0 0.0
    %1318 = vmatpush1.msra.mxu0 %v258
    %1319 = vmatprep.subr.mxu0 0.0
    %1320 = vmatpush1.msra.mxu0 %v259
    %1321 = vmatprep.subr.mxu0 0.0
    %1322 = vmatpush1.msra.mxu0 %v260
    %1323 = vmatprep.subr.mxu0 0.0
    %1324 = vmatpush1.msra.mxu0 %v261
    %1325 = vmatprep.subr.mxu0 0.0
    %1326 = vmatpush1.msra.mxu0 %v262
    %1327 = vmatprep.subr.mxu0 0.0
    %1328 = vmatpush1.msra.mxu0 %v263
    %1329 = vmatprep.subr.mxu0 0.0
    %1330 = vmatpush1.msra.mxu0 %v264
    %1331 = vmatprep.subr.mxu0 0.0
    %1332 = vmatpush1.msra.mxu0 %v265
    %1333 = vmatprep.subr.mxu0 0.0
    %1334 = vmatpush1.msra.mxu0 %v266
    %1335 = vmatprep.subr.mxu0 0.0
    %1336 = vmatpush1.msra.mxu0 %v267
    %1337 = vmatprep.mubr.f32.mxu0 %v880
    %1338 = vmatmul.mubr.f32.gmra.mrb[0].mxu0 %v57
    %v1339 = vpop.f32.mrb[0].mxu0
    %v1340 = vadd.f32 %v1270, %v1339
    %v1341 = vpop.f32.mrb[0].mxu0
    %1342 = vdwg.mxu0
    %1343 = vmatprep.subr.mxu0 0.0
    %1344 = vmatpush1.msra.mxu0 %v268
    %1345 = vmatprep.subr.mxu0 0.0
    %1346 = vmatpush1.msra.mxu0 %v269
    %1347 = vmatprep.subr.mxu0 0.0
    %1348 = vmatpush1.msra.mxu0 %v270
    %1349 = vmatprep.subr.mxu0 0.0
    %1350 = vmatpush1.msra.mxu0 %v271
    %1351 = vmatprep.subr.mxu0 0.0
    %1352 = vmatpush1.msra.mxu0 %v272
    %1353 = vmatprep.subr.mxu0 0.0
    %1354 = vmatpush1.msra.mxu0 %v273
    %1355 = vmatprep.subr.mxu0 0.0
    %1356 = vmatpush1.msra.mxu0 %v274
    %1357 = vmatprep.subr.mxu0 0.0
    %1358 = vmatpush1.msra.mxu0 %v275
    %1359 = vmatprep.subr.mxu0 0.0
    %1360 = vmatpush1.msra.mxu0 %v276
    %1361 = vmatprep.subr.mxu0 0.0
    %1362 = vmatpush1.msra.mxu0 %v277
    %1363 = vmatprep.subr.mxu0 0.0
    %1364 = vmatpush1.msra.mxu0 %v278
    %1365 = vmatprep.subr.mxu0 0.0
    %1366 = vmatpush1.msra.mxu0 %v279
    %1367 = vmatprep.subr.mxu0 0.0
    %1368 = vmatpush1.msra.mxu0 %v280
    %1369 = vmatprep.subr.mxu0 0.0
    %1370 = vmatpush1.msra.mxu0 %v281
    %1371 = vmatprep.subr.mxu0 0.0
    %1372 = vmatpush1.msra.mxu0 %v282
    %1373 = vmatprep.subr.mxu0 0.0
    %1374 = vmatpush1.msra.mxu0 %v283
    %1375 = vmatprep.subr.mxu0 0.0
    %1376 = vmatpush1.msra.mxu0 %v284
    %1377 = vmatprep.subr.mxu0 0.0
    %1378 = vmatpush1.msra.mxu0 %v285
    %1379 = vmatprep.subr.mxu0 0.0
    %1380 = vmatpush1.msra.mxu0 %v286
    %1381 = vmatprep.subr.mxu0 0.0
    %1382 = vmatpush1.msra.mxu0 %v287
    %1383 = vmatprep.subr.mxu0 0.0
    %1384 = vmatpush1.msra.mxu0 %v288
    %1385 = vmatprep.subr.mxu0 0.0
    %1386 = vmatpush1.msra.mxu0 %v289
    %1387 = vmatprep.subr.mxu0 0.0
    %1388 = vmatpush1.msra.mxu0 %v290
    %1389 = vmatprep.subr.mxu0 0.0
    %1390 = vmatpush1.msra.mxu0 %v291
    %1391 = vmatprep.subr.mxu0 0.0
    %1392 = vmatpush1.msra.mxu0 %v292
    %1393 = vmatprep.subr.mxu0 0.0
    %1394 = vmatpush1.msra.mxu0 %v293
    %1395 = vmatprep.subr.mxu0 0.0
    %1396 = vmatpush1.msra.mxu0 %v294
    %1397 = vmatprep.subr.mxu0 0.0
    %1398 = vmatpush1.msra.mxu0 %v295
    %1399 = vmatprep.subr.mxu0 0.0
    %1400 = vmatpush1.msra.mxu0 %v296
    %1401 = vmatprep.subr.mxu0 0.0
    %1402 = vmatpush1.msra.mxu0 %v297
    %1403 = vmatprep.subr.mxu0 0.0
    %1404 = vmatpush1.msra.mxu0 %v298
    %1405 = vmatprep.subr.mxu0 0.0
    %1406 = vmatpush1.msra.mxu0 %v299
    %1407 = vmatprep.mubr.f32.mxu0 %v881
    %1408 = vmatmul.mubr.f32.gmra.mrb[0].mxu0 %v58
    %v1409 = vpop.f32.mrb[0].mxu0
    %v1410 = vadd.f32 %v1340, %v1409
    %v1411 = vpop.f32.mrb[0].mxu0
    %1412 = vdwg.mxu0
    %1413 = vmatprep.subr.mxu0 0.0
    %1414 = vmatpush1.msra.mxu0 %v300
    %1415 = vmatprep.subr.mxu0 0.0
    %1416 = vmatpush1.msra.mxu0 %v301
    %1417 = vmatprep.subr.mxu0 0.0
    %1418 = vmatpush1.msra.mxu0 %v302
    %1419 = vmatprep.subr.mxu0 0.0
    %1420 = vmatpush1.msra.mxu0 %v303
    %1421 = vmatprep.subr.mxu0 0.0
    %1422 = vmatpush1.msra.mxu0 %v304
    %1423 = vmatprep.subr.mxu0 0.0
    %1424 = vmatpush1.msra.mxu0 %v305
    %1425 = vmatprep.subr.mxu0 0.0
    %1426 = vmatpush1.msra.mxu0 %v306
    %1427 = vmatprep.subr.mxu0 0.0
    %1428 = vmatpush1.msra.mxu0 %v307
    %1429 = vmatprep.subr.mxu0 0.0
    %1430 = vmatpush1.msra.mxu0 %v308
    %1431 = vmatprep.subr.mxu0 0.0
    %1432 = vmatpush1.msra.mxu0 %v309
    %1433 = vmatprep.subr.mxu0 0.0
    %1434 = vmatpush1.msra.mxu0 %v310
    %1435 = vmatprep.subr.mxu0 0.0
    %1436 = vmatpush1.msra.mxu0 %v311
    %1437 = vmatprep.subr.mxu0 0.0
    %1438 = vmatpush1.msra.mxu0 %v312
    %1439 = vmatprep.subr.mxu0 0.0
    %1440 = vmatpush1.msra.mxu0 %v313
    %1441 = vmatprep.subr.mxu0 0.0
    %1442 = vmatpush1.msra.mxu0 %v314
    %1443 = vmatprep.subr.mxu0 0.0
    %1444 = vmatpush1.msra.mxu0 %v315
    %1445 = vmatprep.subr.mxu0 0.0
    %1446 = vmatpush1.msra.mxu0 %v316
    %1447 = vmatprep.subr.mxu0 0.0
    %1448 = vmatpush1.msra.mxu0 %v317
    %1449 = vmatprep.subr.mxu0 0.0
    %1450 = vmatpush1.msra.mxu0 %v318
    %1451 = vmatprep.subr.mxu0 0.0
    %1452 = vmatpush1.msra.mxu0 %v319
    %1453 = vmatprep.subr.mxu0 0.0
    %1454 = vmatpush1.msra.mxu0 %v320
    %1455 = vmatprep.subr.mxu0 0.0
    %1456 = vmatpush1.msra.mxu0 %v321
    %1457 = vmatprep.subr.mxu0 0.0
    %1458 = vmatpush1.msra.mxu0 %v322
    %1459 = vmatprep.subr.mxu0 0.0
    %1460 = vmatpush1.msra.mxu0 %v323
    %1461 = vmatprep.subr.mxu0 0.0
    %1462 = vmatpush1.msra.mxu0 %v324
    %1463 = vmatprep.subr.mxu0 0.0
    %1464 = vmatpush1.msra.mxu0 %v325
    %1465 = vmatprep.subr.mxu0 0.0
    %1466 = vmatpush1.msra.mxu0 %v326
    %1467 = vmatprep.subr.mxu0 0.0
    %1468 = vmatpush1.msra.mxu0 %v327
    %1469 = vmatprep.subr.mxu0 0.0
    %1470 = vmatpush1.msra.mxu0 %v328
    %1471 = vmatprep.subr.mxu0 0.0
    %1472 = vmatpush1.msra.mxu0 %v329
    %1473 = vmatprep.subr.mxu0 0.0
    %1474 = vmatpush1.msra.mxu0 %v330
    %1475 = vmatprep.subr.mxu0 0.0
    %1476 = vmatpush1.msra.mxu0 %v331
    %1477 = vmatprep.mubr.f32.mxu0 %v882
    %1478 = vmatmul.mubr.f32.gmra.mrb[0].mxu0 %v59
    %v1479 = vpop.f32.mrb[0].mxu0
    %v1480 = vadd.f32 %v1410, %v1479
    %v1481 = vpop.f32.mrb[0].mxu0
    %1482 = vdwg.mxu0
    %1483 = vmatprep.subr.mxu0 0.0
    %1484 = vmatpush1.msra.mxu0 %v332
    %1485 = vmatprep.subr.mxu0 0.0
    %1486 = vmatpush1.msra.mxu0 %v333
    %1487 = vmatprep.subr.mxu0 0.0
    %1488 = vmatpush1.msra.mxu0 %v334
    %1489 = vmatprep.subr.mxu0 0.0
    %1490 = vmatpush1.msra.mxu0 %v335
    %1491 = vmatprep.subr.mxu0 0.0
    %1492 = vmatpush1.msra.mxu0 %v336
    %1493 = vmatprep.subr.mxu0 0.0
    %1494 = vmatpush1.msra.mxu0 %v337
    %1495 = vmatprep.subr.mxu0 0.0
    %1496 = vmatpush1.msra.mxu0 %v338
    %1497 = vmatprep.subr.mxu0 0.0
    %1498 = vmatpush1.msra.mxu0 %v339
    %1499 = vmatprep.subr.mxu0 0.0
    %1500 = vmatpush1.msra.mxu0 %v340
    %1501 = vmatprep.subr.mxu0 0.0
    %1502 = vmatpush1.msra.mxu0 %v341
    %1503 = vmatprep.subr.mxu0 0.0
    %1504 = vmatpush1.msra.mxu0 %v342
    %1505 = vmatprep.subr.mxu0 0.0
    %1506 = vmatpush1.msra.mxu0 %v343
    %1507 = vmatprep.subr.mxu0 0.0
    %1508 = vmatpush1.msra.mxu0 %v344
    %1509 = vmatprep.subr.mxu0 0.0
    %1510 = vmatpush1.msra.mxu0 %v345
    %1511 = vmatprep.subr.mxu0 0.0
    %1512 = vmatpush1.msra.mxu0 %v346
    %1513 = vmatprep.subr.mxu0 0.0
    %1514 = vmatpush1.msra.mxu0 %v347
    %1515 = vmatprep.subr.mxu0 0.0
    %1516 = vmatpush1.msra.mxu0 %v348
    %1517 = vmatprep.subr.mxu0 0.0
    %1518 = vmatpush1.msra.mxu0 %v349
    %1519 = vmatprep.subr.mxu0 0.0
    %1520 = vmatpush1.msra.mxu0 %v350
    %1521 = vmatprep.subr.mxu0 0.0
    %1522 = vmatpush1.msra.mxu0 %v351
    %1523 = vmatprep.subr.mxu0 0.0
    %1524 = vmatpush1.msra.mxu0 %v352
    %1525 = vmatprep.subr.mxu0 0.0
    %1526 = vmatpush1.msra.mxu0 %v353
    %1527 = vmatprep.subr.mxu0 0.0
    %1528 = vmatpush1.msra.mxu0 %v354
    %1529 = vmatprep.subr.mxu0 0.0
    %1530 = vmatpush1.msra.mxu0 %v355
    %1531 = vmatprep.subr.mxu0 0.0
    %1532 = vmatpush1.msra.mxu0 %v356
    %1533 = vmatprep.subr.mxu0 0.0
    %1534 = vmatpush1.msra.mxu0 %v357
    %1535 = vmatprep.subr.mxu0 0.0
    %1536 = vmatpush1.msra.mxu0 %v358
    %1537 = vmatprep.subr.mxu0 0.0
    %1538 = vmatpush1.msra.mxu0 %v359
    %1539 = vmatprep.subr.mxu0 0.0
    %1540 = vmatpush1.msra.mxu0 %v360
    %1541 = vmatprep.subr.mxu0 0.0
    %1542 = vmatpush1.msra.mxu0 %v361
    %1543 = vmatprep.subr.mxu0 0.0
    %1544 = vmatpush1.msra.mxu0 %v362
    %1545 = vmatprep.subr.mxu0 0.0
    %1546 = vmatpush1.msra.mxu0 %v363
    %1547 = vmatprep.mubr.f32.mxu0 %v883
    %1548 = vmatmul.mubr.f32.gmra.mrb[0].mxu0 %v60
    %v1549 = vpop.f32.mrb[0].mxu0
    %v1550 = vadd.f32 %v1480, %v1549
    %v1551 = vpop.f32.mrb[0].mxu0
    %1552 = vdwg.mxu0
    %1553 = vmatprep.subr.mxu0 0.0
    %1554 = vmatpush1.msra.mxu0 %v364
    %1555 = vmatprep.subr.mxu0 0.0
    %1556 = vmatpush1.msra.mxu0 %v365
    %1557 = vmatprep.subr.mxu0 0.0
    %1558 = vmatpush1.msra.mxu0 %v366
    %1559 = vmatprep.subr.mxu0 0.0
    %1560 = vmatpush1.msra.mxu0 %v367
    %1561 = vmatprep.subr.mxu0 0.0
    %1562 = vmatpush1.msra.mxu0 %v368
    %1563 = vmatprep.subr.mxu0 0.0
    %1564 = vmatpush1.msra.mxu0 %v369
    %1565 = vmatprep.subr.mxu0 0.0
    %1566 = vmatpush1.msra.mxu0 %v370
    %1567 = vmatprep.subr.mxu0 0.0
    %1568 = vmatpush1.msra.mxu0 %v371
    %1569 = vmatprep.subr.mxu0 0.0
    %1570 = vmatpush1.msra.mxu0 %v372
    %1571 = vmatprep.subr.mxu0 0.0
    %1572 = vmatpush1.msra.mxu0 %v373
    %1573 = vmatprep.subr.mxu0 0.0
    %1574 = vmatpush1.msra.mxu0 %v374
    %1575 = vmatprep.subr.mxu0 0.0
    %1576 = vmatpush1.msra.mxu0 %v375
    %1577 = vmatprep.subr.mxu0 0.0
    %1578 = vmatpush1.msra.mxu0 %v376
    %1579 = vmatprep.subr.mxu0 0.0
    %1580 = vmatpush1.msra.mxu0 %v377
    %1581 = vmatprep.subr.mxu0 0.0
    %1582 = vmatpush1.msra.mxu0 %v378
    %1583 = vmatprep.subr.mxu0 0.0
    %1584 = vmatpush1.msra.mxu0 %v379
    %1585 = vmatprep.subr.mxu0 0.0
    %1586 = vmatpush1.msra.mxu0 %v380
    %1587 = vmatprep.subr.mxu0 0.0
    %1588 = vmatpush1.msra.mxu0 %v381
    %1589 = vmatprep.subr.mxu0 0.0
    %1590 = vmatpush1.msra.mxu0 %v382
    %1591 = vmatprep.subr.mxu0 0.0
    %1592 = vmatpush1.msra.mxu0 %v383
    %1593 = vmatprep.subr.mxu0 0.0
    %1594 = vmatpush1.msra.mxu0 %v384
    %1595 = vmatprep.subr.mxu0 0.0
    %1596 = vmatpush1.msra.mxu0 %v385
    %1597 = vmatprep.subr.mxu0 0.0
    %1598 = vmatpush1.msra.mxu0 %v386
    %1599 = vmatprep.subr.mxu0 0.0
    %1600 = vmatpush1.msra.mxu0 %v387
    %1601 = vmatprep.subr.mxu0 0.0
    %1602 = vmatpush1.msra.mxu0 %v388
    %1603 = vmatprep.subr.mxu0 0.0
    %1604 = vmatpush1.msra.mxu0 %v389
    %1605 = vmatprep.subr.mxu0 0.0
    %1606 = vmatpush1.msra.mxu0 %v390
    %1607 = vmatprep.subr.mxu0 0.0
    %1608 = vmatpush1.msra.mxu0 %v391
    %1609 = vmatprep.subr.mxu0 0.0
    %1610 = vmatpush1.msra.mxu0 %v392
    %1611 = vmatprep.subr.mxu0 0.0
    %1612 = vmatpush1.msra.mxu0 %v393
    %1613 = vmatprep.subr.mxu0 0.0
    %1614 = vmatpush1.msra.mxu0 %v394
    %1615 = vmatprep.subr.mxu0 0.0
    %1616 = vmatpush1.msra.mxu0 %v395
    %1617 = vmatprep.mubr.f32.mxu0 %v884
    %1618 = vmatmul.mubr.f32.gmra.mrb[0].mxu0 %v61
    %v1619 = vpop.f32.mrb[0].mxu0
    %v1620 = vadd.f32 %v1550, %v1619
    %v1621 = vpop.f32.mrb[0].mxu0
    %1622 = vdwg.mxu0
    %1623 = vmatprep.subr.mxu0 0.0
    %1624 = vmatpush1.msra.mxu0 %v396
    %1625 = vmatprep.subr.mxu0 0.0
    %1626 = vmatpush1.msra.mxu0 %v397
    %1627 = vmatprep.subr.mxu0 0.0
    %1628 = vmatpush1.msra.mxu0 %v398
    %1629 = vmatprep.subr.mxu0 0.0
    %1630 = vmatpush1.msra.mxu0 %v399
    %1631 = vmatprep.subr.mxu0 0.0
    %1632 = vmatpush1.msra.mxu0 %v400
    %1633 = vmatprep.subr.mxu0 0.0
    %1634 = vmatpush1.msra.mxu0 %v401
    %1635 = vmatprep.subr.mxu0 0.0
    %1636 = vmatpush1.msra.mxu0 %v402
    %1637 = vmatprep.subr.mxu0 0.0
    %1638 = vmatpush1.msra.mxu0 %v403
    %1639 = vmatprep.subr.mxu0 0.0
    %1640 = vmatpush1.msra.mxu0 %v404
    %1641 = vmatprep.subr.mxu0 0.0
    %1642 = vmatpush1.msra.mxu0 %v405
    %1643 = vmatprep.subr.mxu0 0.0
    %1644 = vmatpush1.msra.mxu0 %v406
    %1645 = vmatprep.subr.mxu0 0.0
    %1646 = vmatpush1.msra.mxu0 %v407
    %1647 = vmatprep.subr.mxu0 0.0
    %1648 = vmatpush1.msra.mxu0 %v408
    %1649 = vmatprep.subr.mxu0 0.0
    %1650 = vmatpush1.msra.mxu0 %v409
    %1651 = vmatprep.subr.mxu0 0.0
    %1652 = vmatpush1.msra.mxu0 %v410
    %1653 = vmatprep.subr.mxu0 0.0
    %1654 = vmatpush1.msra.mxu0 %v411
    %1655 = vmatprep.subr.mxu0 0.0
    %1656 = vmatpush1.msra.mxu0 %v412
    %1657 = vmatprep.subr.mxu0 0.0
    %1658 = vmatpush1.msra.mxu0 %v413
    %1659 = vmatprep.subr.mxu0 0.0
    %1660 = vmatpush1.msra.mxu0 %v414
    %1661 = vmatprep.subr.mxu0 0.0
    %1662 = vmatpush1.msra.mxu0 %v415
    %1663 = vmatprep.subr.mxu0 0.0
    %1664 = vmatpush1.msra.mxu0 %v416
    %1665 = vmatprep.subr.mxu0 0.0
    %1666 = vmatpush1.msra.mxu0 %v417
    %1667 = vmatprep.subr.mxu0 0.0
    %1668 = vmatpush1.msra.mxu0 %v418
    %1669 = vmatprep.subr.mxu0 0.0
    %1670 = vmatpush1.msra.mxu0 %v419
    %1671 = vmatprep.subr.mxu0 0.0
    %1672 = vmatpush1.msra.mxu0 %v420
    %1673 = vmatprep.subr.mxu0 0.0
    %1674 = vmatpush1.msra.mxu0 %v421
    %1675 = vmatprep.subr.mxu0 0.0
    %1676 = vmatpush1.msra.mxu0 %v422
    %1677 = vmatprep.subr.mxu0 0.0
    %1678 = vmatpush1.msra.mxu0 %v423
    %1679 = vmatprep.subr.mxu0 0.0
    %1680 = vmatpush1.msra.mxu0 %v424
    %1681 = vmatprep.subr.mxu0 0.0
    %1682 = vmatpush1.msra.mxu0 %v425
    %1683 = vmatprep.subr.mxu0 0.0
    %1684 = vmatpush1.msra.mxu0 %v426
    %1685 = vmatprep.subr.mxu0 0.0
    %1686 = vmatpush1.msra.mxu0 %v427
    %1687 = vmatprep.mubr.f32.mxu0 %v885
    %1688 = vmatmul.mubr.f32.gmra.mrb[0].mxu0 %v62
    %v1689 = vpop.f32.mrb[0].mxu0
    %v1690 = vadd.f32 %v1620, %v1689
    %v1691 = vpop.f32.mrb[0].mxu0
    %1692 = vdwg.mxu0
    %1693 = vmatprep.subr.mxu0 0.0
    %1694 = vmatpush1.msra.mxu0 %v428
    %1695 = vmatprep.subr.mxu0 0.0
    %1696 = vmatpush1.msra.mxu0 %v429
    %1697 = vmatprep.subr.mxu0 0.0
    %1698 = vmatpush1.msra.mxu0 %v430
    %1699 = vmatprep.subr.mxu0 0.0
    %1700 = vmatpush1.msra.mxu0 %v431
    %1701 = vmatprep.subr.mxu0 0.0
    %1702 = vmatpush1.msra.mxu0 %v432
    %1703 = vmatprep.subr.mxu0 0.0
    %1704 = vmatpush1.msra.mxu0 %v433
    %1705 = vmatprep.subr.mxu0 0.0
    %1706 = vmatpush1.msra.mxu0 %v434
    %1707 = vmatprep.subr.mxu0 0.0
    %1708 = vmatpush1.msra.mxu0 %v435
    %1709 = vmatprep.subr.mxu0 0.0
    %1710 = vmatpush1.msra.mxu0 %v436
    %1711 = vmatprep.subr.mxu0 0.0
    %1712 = vmatpush1.msra.mxu0 %v437
    %1713 = vmatprep.subr.mxu0 0.0
    %1714 = vmatpush1.msra.mxu0 %v438
    %1715 = vmatprep.subr.mxu0 0.0
    %1716 = vmatpush1.msra.mxu0 %v439
    %1717 = vmatprep.subr.mxu0 0.0
    %1718 = vmatpush1.msra.mxu0 %v440
    %1719 = vmatprep.subr.mxu0 0.0
    %1720 = vmatpush1.msra.mxu0 %v441
    %1721 = vmatprep.subr.mxu0 0.0
    %1722 = vmatpush1.msra.mxu0 %v442
    %1723 = vmatprep.subr.mxu0 0.0
    %1724 = vmatpush1.msra.mxu0 %v443
    %1725 = vmatprep.subr.mxu0 0.0
    %1726 = vmatpush1.msra.mxu0 %v444
    %1727 = vmatprep.subr.mxu0 0.0
    %1728 = vmatpush1.msra.mxu0 %v445
    %1729 = vmatprep.subr.mxu0 0.0
    %1730 = vmatpush1.msra.mxu0 %v446
    %1731 = vmatprep.subr.mxu0 0.0
    %1732 = vmatpush1.msra.mxu0 %v447
    %1733 = vmatprep.subr.mxu0 0.0
    %1734 = vmatpush1.msra.mxu0 %v448
    %1735 = vmatprep.subr.mxu0 0.0
    %1736 = vmatpush1.msra.mxu0 %v449
    %1737 = vmatprep.subr.mxu0 0.0
    %1738 = vmatpush1.msra.mxu0 %v450
    %1739 = vmatprep.subr.mxu0 0.0
    %1740 = vmatpush1.msra.mxu0 %v451
    %1741 = vmatprep.subr.mxu0 0.0
    %1742 = vmatpush1.msra.mxu0 %v452
    %1743 = vmatprep.subr.mxu0 0.0
    %1744 = vmatpush1.msra.mxu0 %v453
    %1745 = vmatprep.subr.mxu0 0.0
    %1746 = vmatpush1.msra.mxu0 %v454
    %1747 = vmatprep.subr.mxu0 0.0
    %1748 = vmatpush1.msra.mxu0 %v455
    %1749 = vmatprep.subr.mxu0 0.0
    %1750 = vmatpush1.msra.mxu0 %v456
    %1751 = vmatprep.subr.mxu0 0.0
    %1752 = vmatpush1.msra.mxu0 %v457
    %1753 = vmatprep.subr.mxu0 0.0
    %1754 = vmatpush1.msra.mxu0 %v458
    %1755 = vmatprep.subr.mxu0 0.0
    %1756 = vmatpush1.msra.mxu0 %v459
    %1757 = vmatprep.mubr.f32.mxu0 %v886
    %1758 = vmatmul.mubr.f32.gmra.mrb[0].mxu0 %v63
    %v1759 = vpop.f32.mrb[0].mxu0
    %v1760 = vadd.f32 %v1690, %v1759
    %v1761 = vpop.f32.mrb[0].mxu0
    %1762 = vdwg.mxu0
    %1763 = vmatprep.subr.mxu0 0.0
    %1764 = vmatpush1.msra.mxu0 %v460
    %1765 = vmatprep.subr.mxu0 0.0
    %1766 = vmatpush1.msra.mxu0 %v461
    %1767 = vmatprep.subr.mxu0 0.0
    %1768 = vmatpush1.msra.mxu0 %v462
    %1769 = vmatprep.subr.mxu0 0.0
    %1770 = vmatpush1.msra.mxu0 %v463
    %1771 = vmatprep.subr.mxu0 0.0
    %1772 = vmatpush1.msra.mxu0 %v464
    %1773 = vmatprep.subr.mxu0 0.0
    %1774 = vmatpush1.msra.mxu0 %v465
    %1775 = vmatprep.subr.mxu0 0.0
    %1776 = vmatpush1.msra.mxu0 %v466
    %1777 = vmatprep.subr.mxu0 0.0
    %1778 = vmatpush1.msra.mxu0 %v467
    %1779 = vmatprep.subr.mxu0 0.0
    %1780 = vmatpush1.msra.mxu0 %v468
    %1781 = vmatprep.subr.mxu0 0.0
    %1782 = vmatpush1.msra.mxu0 %v469
    %1783 = vmatprep.subr.mxu0 0.0
    %1784 = vmatpush1.msra.mxu0 %v470
    %1785 = vmatprep.subr.mxu0 0.0
    %1786 = vmatpush1.msra.mxu0 %v471
    %1787 = vmatprep.subr.mxu0 0.0
    %1788 = vmatpush1.msra.mxu0 %v472
    %1789 = vmatprep.subr.mxu0 0.0
    %1790 = vmatpush1.msra.mxu0 %v473
    %1791 = vmatprep.subr.mxu0 0.0
    %1792 = vmatpush1.msra.mxu0 %v474
    %1793 = vmatprep.subr.mxu0 0.0
    %1794 = vmatpush1.msra.mxu0 %v475
    %1795 = vmatprep.subr.mxu0 0.0
    %1796 = vmatpush1.msra.mxu0 %v476
    %1797 = vmatprep.subr.mxu0 0.0
    %1798 = vmatpush1.msra.mxu0 %v477
    %1799 = vmatprep.subr.mxu0 0.0
    %1800 = vmatpush1.msra.mxu0 %v478
    %1801 = vmatprep.subr.mxu0 0.0
    %1802 = vmatpush1.msra.mxu0 %v479
    %1803 = vmatprep.subr.mxu0 0.0
    %1804 = vmatpush1.msra.mxu0 %v480
    %1805 = vmatprep.subr.mxu0 0.0
    %1806 = vmatpush1.msra.mxu0 %v481
    %1807 = vmatprep.subr.mxu0 0.0
    %1808 = vmatpush1.msra.mxu0 %v482
    %1809 = vmatprep.subr.mxu0 0.0
    %1810 = vmatpush1.msra.mxu0 %v483
    %1811 = vmatprep.subr.mxu0 0.0
    %1812 = vmatpush1.msra.mxu0 %v484
    %1813 = vmatprep.subr.mxu0 0.0
    %1814 = vmatpush1.msra.mxu0 %v485
    %1815 = vmatprep.subr.mxu0 0.0
    %1816 = vmatpush1.msra.mxu0 %v486
    %1817 = vmatprep.subr.mxu0 0.0
    %1818 = vmatpush1.msra.mxu0 %v487
    %1819 = vmatprep.subr.mxu0 0.0
    %1820 = vmatpush1.msra.mxu0 %v488
    %1821 = vmatprep.subr.mxu0 0.0
    %1822 = vmatpush1.msra.mxu0 %v489
    %1823 = vmatprep.subr.mxu0 0.0
    %1824 = vmatpush1.msra.mxu0 %v490
    %1825 = vmatprep.subr.mxu0 0.0
    %1826 = vmatpush1.msra.mxu0 %v491
    %1827 = vmatprep.mubr.f32.mxu0 %v887
    %1828 = vmatmul.mubr.f32.gmra.mrb[0].mxu0 %v64
    %v1829 = vpop.f32.mrb[0].mxu0
    %v1830 = vadd.f32 %v1760, %v1829
    %v1831 = vpop.f32.mrb[0].mxu0
    %1832 = vdwg.mxu0
    %1833 = vmatprep.subr.mxu0 0.0
    %1834 = vmatpush1.msra.mxu0 %v492
    %1835 = vmatprep.subr.mxu0 0.0
    %1836 = vmatpush1.msra.mxu0 %v493
    %1837 = vmatprep.subr.mxu0 0.0
    %1838 = vmatpush1.msra.mxu0 %v494
    %1839 = vmatprep.subr.mxu0 0.0
    %1840 = vmatpush1.msra.mxu0 %v495
    %1841 = vmatprep.subr.mxu0 0.0
    %1842 = vmatpush1.msra.mxu0 %v496
    %1843 = vmatprep.subr.mxu0 0.0
    %1844 = vmatpush1.msra.mxu0 %v497
    %1845 = vmatprep.subr.mxu0 0.0
    %1846 = vmatpush1.msra.mxu0 %v498
    %1847 = vmatprep.subr.mxu0 0.0
    %1848 = vmatpush1.msra.mxu0 %v499
    %1849 = vmatprep.subr.mxu0 0.0
    %1850 = vmatpush1.msra.mxu0 %v500
    %1851 = vmatprep.subr.mxu0 0.0
    %1852 = vmatpush1.msra.mxu0 %v501
    %1853 = vmatprep.subr.mxu0 0.0
    %1854 = vmatpush1.msra.mxu0 %v502
    %1855 = vmatprep.subr.mxu0 0.0
    %1856 = vmatpush1.msra.mxu0 %v503
    %1857 = vmatprep.subr.mxu0 0.0
    %1858 = vmatpush1.msra.mxu0 %v504
    %1859 = vmatprep.subr.mxu0 0.0
    %1860 = vmatpush1.msra.mxu0 %v505
    %1861 = vmatprep.subr.mxu0 0.0
    %1862 = vmatpush1.msra.mxu0 %v506
    %1863 = vmatprep.subr.mxu0 0.0
    %1864 = vmatpush1.msra.mxu0 %v507
    %1865 = vmatprep.subr.mxu0 0.0
    %1866 = vmatpush1.msra.mxu0 %v508
    %1867 = vmatprep.subr.mxu0 0.0
    %1868 = vmatpush1.msra.mxu0 %v509
    %1869 = vmatprep.subr.mxu0 0.0
    %1870 = vmatpush1.msra.mxu0 %v510
    %1871 = vmatprep.subr.mxu0 0.0
    %1872 = vmatpush1.msra.mxu0 %v511
    %1873 = vmatprep.subr.mxu0 0.0
    %1874 = vmatpush1.msra.mxu0 %v512
    %1875 = vmatprep.subr.mxu0 0.0
    %1876 = vmatpush1.msra.mxu0 %v513
    %1877 = vmatprep.subr.mxu0 0.0
    %1878 = vmatpush1.msra.mxu0 %v514
    %1879 = vmatprep.subr.mxu0 0.0
    %1880 = vmatpush1.msra.mxu0 %v515
    %1881 = vmatprep.subr.mxu0 0.0
    %1882 = vmatpush1.msra.mxu0 %v516
    %1883 = vmatprep.subr.mxu0 0.0
    %1884 = vmatpush1.msra.mxu0 %v517
    %1885 = vmatprep.subr.mxu0 0.0
    %1886 = vmatpush1.msra.mxu0 %v518
    %1887 = vmatprep.subr.mxu0 0.0
    %1888 = vmatpush1.msra.mxu0 %v519
    %1889 = vmatprep.subr.mxu0 0.0
    %1890 = vmatpush1.msra.mxu0 %v520
    %1891 = vmatprep.subr.mxu0 0.0
    %1892 = vmatpush1.msra.mxu0 %v521
    %1893 = vmatprep.subr.mxu0 0.0
    %1894 = vmatpush1.msra.mxu0 %v522
    %1895 = vmatprep.subr.mxu0 0.0
    %1896 = vmatpush1.msra.mxu0 %v523
    %1897 = vmatprep.mubr.f32.mxu0 %v888
    %1898 = vmatmul.mubr.f32.gmra.mrb[0].mxu0 %v65
    %v1899 = vpop.f32.mrb[0].mxu0
    %v1900 = vadd.f32 %v1830, %v1899
    %v1901 = vpop.f32.mrb[0].mxu0
    %1902 = vdwg.mxu0
    %1903 = vmatprep.subr.mxu0 0.0
    %1904 = vmatpush1.msra.mxu0 %v524
    %1905 = vmatprep.subr.mxu0 0.0
    %1906 = vmatpush1.msra.mxu0 %v525
    %1907 = vmatprep.subr.mxu0 0.0
    %1908 = vmatpush1.msra.mxu0 %v526
    %1909 = vmatprep.subr.mxu0 0.0
    %1910 = vmatpush1.msra.mxu0 %v527
    %1911 = vmatprep.subr.mxu0 0.0
    %1912 = vmatpush1.msra.mxu0 %v528
    %1913 = vmatprep.subr.mxu0 0.0
    %1914 = vmatpush1.msra.mxu0 %v529
    %1915 = vmatprep.subr.mxu0 0.0
    %1916 = vmatpush1.msra.mxu0 %v530
    %1917 = vmatprep.subr.mxu0 0.0
    %1918 = vmatpush1.msra.mxu0 %v531
    %1919 = vmatprep.subr.mxu0 0.0
    %1920 = vmatpush1.msra.mxu0 %v532
    %1921 = vmatprep.subr.mxu0 0.0
    %1922 = vmatpush1.msra.mxu0 %v533
    %1923 = vmatprep.subr.mxu0 0.0
    %1924 = vmatpush1.msra.mxu0 %v534
    %1925 = vmatprep.subr.mxu0 0.0
    %1926 = vmatpush1.msra.mxu0 %v535
    %1927 = vmatprep.subr.mxu0 0.0
    %1928 = vmatpush1.msra.mxu0 %v536
    %1929 = vmatprep.subr.mxu0 0.0
    %1930 = vmatpush1.msra.mxu0 %v537
    %1931 = vmatprep.subr.mxu0 0.0
    %1932 = vmatpush1.msra.mxu0 %v538
    %1933 = vmatprep.subr.mxu0 0.0
    %1934 = vmatpush1.msra.mxu0 %v539
    %1935 = vmatprep.subr.mxu0 0.0
    %1936 = vmatpush1.msra.mxu0 %v540
    %1937 = vmatprep.subr.mxu0 0.0
    %1938 = vmatpush1.msra.mxu0 %v541
    %1939 = vmatprep.subr.mxu0 0.0
    %1940 = vmatpush1.msra.mxu0 %v542
    %1941 = vmatprep.subr.mxu0 0.0
    %1942 = vmatpush1.msra.mxu0 %v543
    %1943 = vmatprep.subr.mxu0 0.0
    %1944 = vmatpush1.msra.mxu0 %v544
    %1945 = vmatprep.subr.mxu0 0.0
    %1946 = vmatpush1.msra.mxu0 %v545
    %1947 = vmatprep.subr.mxu0 0.0
    %1948 = vmatpush1.msra.mxu0 %v546
    %1949 = vmatprep.subr.mxu0 0.0
    %1950 = vmatpush1.msra.mxu0 %v547
    %1951 = vmatprep.subr.mxu0 0.0
    %1952 = vmatpush1.msra.mxu0 %v548
    %1953 = vmatprep.subr.mxu0 0.0
    %1954 = vmatpush1.msra.mxu0 %v549
    %1955 = vmatprep.subr.mxu0 0.0
    %1956 = vmatpush1.msra.mxu0 %v550
    %1957 = vmatprep.subr.mxu0 0.0
    %1958 = vmatpush1.msra.mxu0 %v551
    %1959 = vmatprep.subr.mxu0 0.0
    %1960 = vmatpush1.msra.mxu0 %v552
    %1961 = vmatprep.subr.mxu0 0.0
    %1962 = vmatpush1.msra.mxu0 %v553
    %1963 = vmatprep.subr.mxu0 0.0
    %1964 = vmatpush1.msra.mxu0 %v554
    %1965 = vmatprep.subr.mxu0 0.0
    %1966 = vmatpush1.msra.mxu0 %v555
    %1967 = vmatprep.mubr.f32.mxu0 %v889
    %1968 = vmatmul.mubr.f32.gmra.mrb[0].mxu0 %v66
    %v1969 = vpop.f32.mrb[0].mxu0
    %v1970 = vadd.f32 %v1900, %v1969
    %v1971 = vpop.f32.mrb[0].mxu0
    %1972 = vdwg.mxu0
    %1973 = vmatprep.subr.mxu0 0.0
    %1974 = vmatpush1.msra.mxu0 %v556
    %1975 = vmatprep.subr.mxu0 0.0
    %1976 = vmatpush1.msra.mxu0 %v557
    %1977 = vmatprep.subr.mxu0 0.0
    %1978 = vmatpush1.msra.mxu0 %v558
    %1979 = vmatprep.subr.mxu0 0.0
    %1980 = vmatpush1.msra.mxu0 %v559
    %1981 = vmatprep.subr.mxu0 0.0
    %1982 = vmatpush1.msra.mxu0 %v560
    %1983 = vmatprep.subr.mxu0 0.0
    %1984 = vmatpush1.msra.mxu0 %v561
    %1985 = vmatprep.subr.mxu0 0.0
    %1986 = vmatpush1.msra.mxu0 %v562
    %1987 = vmatprep.subr.mxu0 0.0
    %1988 = vmatpush1.msra.mxu0 %v563
    %1989 = vmatprep.subr.mxu0 0.0
    %1990 = vmatpush1.msra.mxu0 %v564
    %1991 = vmatprep.subr.mxu0 0.0
    %1992 = vmatpush1.msra.mxu0 %v565
    %1993 = vmatprep.subr.mxu0 0.0
    %1994 = vmatpush1.msra.mxu0 %v566
    %1995 = vmatprep.subr.mxu0 0.0
    %1996 = vmatpush1.msra.mxu0 %v567
    %1997 = vmatprep.subr.mxu0 0.0
    %1998 = vmatpush1.msra.mxu0 %v568
    %1999 = vmatprep.subr.mxu0 0.0
    %2000 = vmatpush1.msra.mxu0 %v569
    %2001 = vmatprep.subr.mxu0 0.0
    %2002 = vmatpush1.msra.mxu0 %v570
    %2003 = vmatprep.subr.mxu0 0.0
    %2004 = vmatpush1.msra.mxu0 %v571
    %2005 = vmatprep.subr.mxu0 0.0
    %2006 = vmatpush1.msra.mxu0 %v572
    %2007 = vmatprep.subr.mxu0 0.0
    %2008 = vmatpush1.msra.mxu0 %v573
    %2009 = vmatprep.subr.mxu0 0.0
    %2010 = vmatpush1.msra.mxu0 %v574
    %2011 = vmatprep.subr.mxu0 0.0
    %2012 = vmatpush1.msra.mxu0 %v575
    %2013 = vmatprep.subr.mxu0 0.0
    %2014 = vmatpush1.msra.mxu0 %v576
    %2015 = vmatprep.subr.mxu0 0.0
    %2016 = vmatpush1.msra.mxu0 %v577
    %2017 = vmatprep.subr.mxu0 0.0
    %2018 = vmatpush1.msra.mxu0 %v578
    %2019 = vmatprep.subr.mxu0 0.0
    %2020 = vmatpush1.msra.mxu0 %v579
    %2021 = vmatprep.subr.mxu0 0.0
    %2022 = vmatpush1.msra.mxu0 %v580
    %2023 = vmatprep.subr.mxu0 0.0
    %2024 = vmatpush1.msra.mxu0 %v581
    %2025 = vmatprep.subr.mxu0 0.0
    %2026 = vmatpush1.msra.mxu0 %v582
    %2027 = vmatprep.subr.mxu0 0.0
    %2028 = vmatpush1.msra.mxu0 %v583
    %2029 = vmatprep.subr.mxu0 0.0
    %2030 = vmatpush1.msra.mxu0 %v584
    %2031 = vmatprep.subr.mxu0 0.0
    %2032 = vmatpush1.msra.mxu0 %v585
    %2033 = vmatprep.subr.mxu0 0.0
    %2034 = vmatpush1.msra.mxu0 %v586
    %2035 = vmatprep.subr.mxu0 0.0
    %2036 = vmatpush1.msra.mxu0 %v587
    %2037 = vmatprep.mubr.f32.mxu0 %v890
    %2038 = vmatmul.mubr.f32.gmra.mrb[0].mxu0 %v67
    %v2039 = vpop.f32.mrb[0].mxu0
    %v2040 = vadd.f32 %v1970, %v2039
    %v2041 = vpop.f32.mrb[0].mxu0
    %2042 = vdwg.mxu0
    %2043 = vmatprep.subr.mxu0 0.0
    %2044 = vmatpush1.msra.mxu0 %v588
    %2045 = vmatprep.subr.mxu0 0.0
    %2046 = vmatpush1.msra.mxu0 %v589
    %2047 = vmatprep.subr.mxu0 0.0
    %2048 = vmatpush1.msra.mxu0 %v590
    %2049 = vmatprep.subr.mxu0 0.0
    %2050 = vmatpush1.msra.mxu0 %v591
    %2051 = vmatprep.subr.mxu0 0.0
    %2052 = vmatpush1.msra.mxu0 %v592
    %2053 = vmatprep.subr.mxu0 0.0
    %2054 = vmatpush1.msra.mxu0 %v593
    %2055 = vmatprep.subr.mxu0 0.0
    %2056 = vmatpush1.msra.mxu0 %v594
    %2057 = vmatprep.subr.mxu0 0.0
    %2058 = vmatpush1.msra.mxu0 %v595
    %2059 = vmatprep.subr.mxu0 0.0
    %2060 = vmatpush1.msra.mxu0 %v596
    %2061 = vmatprep.subr.mxu0 0.0
    %2062 = vmatpush1.msra.mxu0 %v597
    %2063 = vmatprep.subr.mxu0 0.0
    %2064 = vmatpush1.msra.mxu0 %v598
    %2065 = vmatprep.subr.mxu0 0.0
    %2066 = vmatpush1.msra.mxu0 %v599
    %2067 = vmatprep.subr.mxu0 0.0
    %2068 = vmatpush1.msra.mxu0 %v600
    %2069 = vmatprep.subr.mxu0 0.0
    %2070 = vmatpush1.msra.mxu0 %v601
    %2071 = vmatprep.subr.mxu0 0.0
    %2072 = vmatpush1.msra.mxu0 %v602
    %2073 = vmatprep.subr.mxu0 0.0
    %2074 = vmatpush1.msra.mxu0 %v603
    %2075 = vmatprep.subr.mxu0 0.0
    %2076 = vmatpush1.msra.mxu0 %v604
    %2077 = vmatprep.subr.mxu0 0.0
    %2078 = vmatpush1.msra.mxu0 %v605
    %2079 = vmatprep.subr.mxu0 0.0
    %2080 = vmatpush1.msra.mxu0 %v606
    %2081 = vmatprep.subr.mxu0 0.0
    %2082 = vmatpush1.msra.mxu0 %v607
    %2083 = vmatprep.subr.mxu0 0.0
    %2084 = vmatpush1.msra.mxu0 %v608
    %2085 = vmatprep.subr.mxu0 0.0
    %2086 = vmatpush1.msra.mxu0 %v609
    %2087 = vmatprep.subr.mxu0 0.0
    %2088 = vmatpush1.msra.mxu0 %v610
    %2089 = vmatprep.subr.mxu0 0.0
    %2090 = vmatpush1.msra.mxu0 %v611
    %2091 = vmatprep.subr.mxu0 0.0
    %2092 = vmatpush1.msra.mxu0 %v612
    %2093 = vmatprep.subr.mxu0 0.0
    %2094 = vmatpush1.msra.mxu0 %v613
    %2095 = vmatprep.subr.mxu0 0.0
    %2096 = vmatpush1.msra.mxu0 %v614
    %2097 = vmatprep.subr.mxu0 0.0
    %2098 = vmatpush1.msra.mxu0 %v615
    %2099 = vmatprep.subr.mxu0 0.0
    %2100 = vmatpush1.msra.mxu0 %v616
    %2101 = vmatprep.subr.mxu0 0.0
    %2102 = vmatpush1.msra.mxu0 %v617
    %2103 = vmatprep.subr.mxu0 0.0
    %2104 = vmatpush1.msra.mxu0 %v618
    %2105 = vmatprep.subr.mxu0 0.0
    %2106 = vmatpush1.msra.mxu0 %v619
    %2107 = vmatprep.mubr.f32.mxu0 %v891
    %2108 = vmatmul.mubr.f32.gmra.mrb[0].mxu0 %v68
    %v2109 = vpop.f32.mrb[0].mxu0
    %v2110 = vadd.f32 %v2040, %v2109
    %v2111 = vpop.f32.mrb[0].mxu0
    %2112 = vdwg.mxu0
    %2113 = vmatprep.subr.mxu0 0.0
    %2114 = vmatpush1.msra.mxu0 %v620
    %2115 = vmatprep.subr.mxu0 0.0
    %2116 = vmatpush1.msra.mxu0 %v621
    %2117 = vmatprep.subr.mxu0 0.0
    %2118 = vmatpush1.msra.mxu0 %v622
    %2119 = vmatprep.subr.mxu0 0.0
    %2120 = vmatpush1.msra.mxu0 %v623
    %2121 = vmatprep.subr.mxu0 0.0
    %2122 = vmatpush1.msra.mxu0 %v624
    %2123 = vmatprep.subr.mxu0 0.0
    %2124 = vmatpush1.msra.mxu0 %v625
    %2125 = vmatprep.subr.mxu0 0.0
    %2126 = vmatpush1.msra.mxu0 %v626
    %2127 = vmatprep.subr.mxu0 0.0
    %2128 = vmatpush1.msra.mxu0 %v627
    %2129 = vmatprep.subr.mxu0 0.0
    %2130 = vmatpush1.msra.mxu0 %v628
    %2131 = vmatprep.subr.mxu0 0.0
    %2132 = vmatpush1.msra.mxu0 %v629
    %2133 = vmatprep.subr.mxu0 0.0
    %2134 = vmatpush1.msra.mxu0 %v630
    %2135 = vmatprep.subr.mxu0 0.0
    %2136 = vmatpush1.msra.mxu0 %v631
    %2137 = vmatprep.subr.mxu0 0.0
    %2138 = vmatpush1.msra.mxu0 %v632
    %2139 = vmatprep.subr.mxu0 0.0
    %2140 = vmatpush1.msra.mxu0 %v633
    %2141 = vmatprep.subr.mxu0 0.0
    %2142 = vmatpush1.msra.mxu0 %v634
    %2143 = vmatprep.subr.mxu0 0.0
    %2144 = vmatpush1.msra.mxu0 %v635
    %2145 = vmatprep.subr.mxu0 0.0
    %2146 = vmatpush1.msra.mxu0 %v636
    %2147 = vmatprep.subr.mxu0 0.0
    %2148 = vmatpush1.msra.mxu0 %v637
    %2149 = vmatprep.subr.mxu0 0.0
    %2150 = vmatpush1.msra.mxu0 %v638
    %2151 = vmatprep.subr.mxu0 0.0
    %2152 = vmatpush1.msra.mxu0 %v639
    %2153 = vmatprep.subr.mxu0 0.0
    %2154 = vmatpush1.msra.mxu0 %v640
    %2155 = vmatprep.subr.mxu0 0.0
    %2156 = vmatpush1.msra.mxu0 %v641
    %2157 = vmatprep.subr.mxu0 0.0
    %2158 = vmatpush1.msra.mxu0 %v642
    %2159 = vmatprep.subr.mxu0 0.0
    %2160 = vmatpush1.msra.mxu0 %v643
    %2161 = vmatprep.subr.mxu0 0.0
    %2162 = vmatpush1.msra.mxu0 %v644
    %2163 = vmatprep.subr.mxu0 0.0
    %2164 = vmatpush1.msra.mxu0 %v645
    %2165 = vmatprep.subr.mxu0 0.0
    %2166 = vmatpush1.msra.mxu0 %v646
    %2167 = vmatprep.subr.mxu0 0.0
    %2168 = vmatpush1.msra.mxu0 %v647
    %2169 = vmatprep.subr.mxu0 0.0
    %2170 = vmatpush1.msra.mxu0 %v648
    %2171 = vmatprep.subr.mxu0 0.0
    %2172 = vmatpush1.msra.mxu0 %v649
    %2173 = vmatprep.subr.mxu0 0.0
    %2174 = vmatpush1.msra.mxu0 %v650
    %2175 = vmatprep.subr.mxu0 0.0
    %2176 = vmatpush1.msra.mxu0 %v651
    %2177 = vmatprep.mubr.f32.mxu0 %v892
    %2178 = vmatmul.mubr.f32.gmra.mrb[0].mxu0 %v69
    %v2179 = vpop.f32.mrb[0].mxu0
    %v2180 = vadd.f32 %v2110, %v2179
    %v2181 = vpop.f32.mrb[0].mxu0
    %2182 = vdwg.mxu0
    %2183 = vmatprep.subr.mxu0 0.0
    %2184 = vmatpush1.msra.mxu0 %v652
    %2185 = vmatprep.subr.mxu0 0.0
    %2186 = vmatpush1.msra.mxu0 %v653
    %2187 = vmatprep.subr.mxu0 0.0
    %2188 = vmatpush1.msra.mxu0 %v654
    %2189 = vmatprep.subr.mxu0 0.0
    %2190 = vmatpush1.msra.mxu0 %v655
    %2191 = vmatprep.subr.mxu0 0.0
    %2192 = vmatpush1.msra.mxu0 %v656
    %2193 = vmatprep.subr.mxu0 0.0
    %2194 = vmatpush1.msra.mxu0 %v657
    %2195 = vmatprep.subr.mxu0 0.0
    %2196 = vmatpush1.msra.mxu0 %v658
    %2197 = vmatprep.subr.mxu0 0.0
    %2198 = vmatpush1.msra.mxu0 %v659
    %2199 = vmatprep.subr.mxu0 0.0
    %2200 = vmatpush1.msra.mxu0 %v660
    %2201 = vmatprep.subr.mxu0 0.0
    %2202 = vmatpush1.msra.mxu0 %v661
    %2203 = vmatprep.subr.mxu0 0.0
    %2204 = vmatpush1.msra.mxu0 %v662
    %2205 = vmatprep.subr.mxu0 0.0
    %2206 = vmatpush1.msra.mxu0 %v663
    %2207 = vmatprep.subr.mxu0 0.0
    %2208 = vmatpush1.msra.mxu0 %v664
    %2209 = vmatprep.subr.mxu0 0.0
    %2210 = vmatpush1.msra.mxu0 %v665
    %2211 = vmatprep.subr.mxu0 0.0
    %2212 = vmatpush1.msra.mxu0 %v666
    %2213 = vmatprep.subr.mxu0 0.0
    %2214 = vmatpush1.msra.mxu0 %v667
    %2215 = vmatprep.subr.mxu0 0.0
    %2216 = vmatpush1.msra.mxu0 %v668
    %2217 = vmatprep.subr.mxu0 0.0
    %2218 = vmatpush1.msra.mxu0 %v669
    %2219 = vmatprep.subr.mxu0 0.0
    %2220 = vmatpush1.msra.mxu0 %v670
    %2221 = vmatprep.subr.mxu0 0.0
    %2222 = vmatpush1.msra.mxu0 %v671
    %2223 = vmatprep.subr.mxu0 0.0
    %2224 = vmatpush1.msra.mxu0 %v672
    %2225 = vmatprep.subr.mxu0 0.0
    %2226 = vmatpush1.msra.mxu0 %v673
    %2227 = vmatprep.subr.mxu0 0.0
    %2228 = vmatpush1.msra.mxu0 %v674
    %2229 = vmatprep.subr.mxu0 0.0
    %2230 = vmatpush1.msra.mxu0 %v675
    %2231 = vmatprep.subr.mxu0 0.0
    %2232 = vmatpush1.msra.mxu0 %v676
    %2233 = vmatprep.subr.mxu0 0.0
    %2234 = vmatpush1.msra.mxu0 %v677
    %2235 = vmatprep.subr.mxu0 0.0
    %2236 = vmatpush1.msra.mxu0 %v678
    %2237 = vmatprep.subr.mxu0 0.0
    %2238 = vmatpush1.msra.mxu0 %v679
    %2239 = vmatprep.subr.mxu0 0.0
    %2240 = vmatpush1.msra.mxu0 %v680
    %2241 = vmatprep.subr.mxu0 0.0
    %2242 = vmatpush1.msra.mxu0 %v681
    %2243 = vmatprep.subr.mxu0 0.0
    %2244 = vmatpush1.msra.mxu0 %v682
    %2245 = vmatprep.subr.mxu0 0.0
    %2246 = vmatpush1.msra.mxu0 %v683
    %2247 = vmatprep.mubr.f32.mxu0 %v893
    %2248 = vmatmul.mubr.f32.gmra.mrb[0].mxu0 %v70
    %v2249 = vpop.f32.mrb[0].mxu0
    %v2250 = vadd.f32 %v2180, %v2249
    %v2251 = vpop.f32.mrb[0].mxu0
    %2252 = vdwg.mxu0
    %2253 = vmatprep.subr.mxu0 0.0
    %2254 = vmatpush1.msra.mxu0 %v684
    %2255 = vmatprep.subr.mxu0 0.0
    %2256 = vmatpush1.msra.mxu0 %v685
    %2257 = vmatprep.subr.mxu0 0.0
    %2258 = vmatpush1.msra.mxu0 %v686
    %2259 = vmatprep.subr.mxu0 0.0
    %2260 = vmatpush1.msra.mxu0 %v687
    %2261 = vmatprep.subr.mxu0 0.0
    %2262 = vmatpush1.msra.mxu0 %v688
    %2263 = vmatprep.subr.mxu0 0.0
    %2264 = vmatpush1.msra.mxu0 %v689
    %2265 = vmatprep.subr.mxu0 0.0
    %2266 = vmatpush1.msra.mxu0 %v690
    %2267 = vmatprep.subr.mxu0 0.0
    %2268 = vmatpush1.msra.mxu0 %v691
    %2269 = vmatprep.subr.mxu0 0.0
    %2270 = vmatpush1.msra.mxu0 %v692
    %2271 = vmatprep.subr.mxu0 0.0
    %2272 = vmatpush1.msra.mxu0 %v693
    %2273 = vmatprep.subr.mxu0 0.0
    %2274 = vmatpush1.msra.mxu0 %v694
    %2275 = vmatprep.subr.mxu0 0.0
    %2276 = vmatpush1.msra.mxu0 %v695
    %2277 = vmatprep.subr.mxu0 0.0
    %2278 = vmatpush1.msra.mxu0 %v696
    %2279 = vmatprep.subr.mxu0 0.0
    %2280 = vmatpush1.msra.mxu0 %v697
    %2281 = vmatprep.subr.mxu0 0.0
    %2282 = vmatpush1.msra.mxu0 %v698
    %2283 = vmatprep.subr.mxu0 0.0
    %2284 = vmatpush1.msra.mxu0 %v699
    %2285 = vmatprep.subr.mxu0 0.0
    %2286 = vmatpush1.msra.mxu0 %v700
    %2287 = vmatprep.subr.mxu0 0.0
    %2288 = vmatpush1.msra.mxu0 %v701
    %2289 = vmatprep.subr.mxu0 0.0
    %2290 = vmatpush1.msra.mxu0 %v702
    %2291 = vmatprep.subr.mxu0 0.0
    %2292 = vmatpush1.msra.mxu0 %v703
    %2293 = vmatprep.subr.mxu0 0.0
    %2294 = vmatpush1.msra.mxu0 %v704
    %2295 = vmatprep.subr.mxu0 0.0
    %2296 = vmatpush1.msra.mxu0 %v705
    %2297 = vmatprep.subr.mxu0 0.0
    %2298 = vmatpush1.msra.mxu0 %v706
    %2299 = vmatprep.subr.mxu0 0.0
    %2300 = vmatpush1.msra.mxu0 %v707
    %2301 = vmatprep.subr.mxu0 0.0
    %2302 = vmatpush1.msra.mxu0 %v708
    %2303 = vmatprep.subr.mxu0 0.0
    %2304 = vmatpush1.msra.mxu0 %v709
    %2305 = vmatprep.subr.mxu0 0.0
    %2306 = vmatpush1.msra.mxu0 %v710
    %2307 = vmatprep.subr.mxu0 0.0
    %2308 = vmatpush1.msra.mxu0 %v711
    %2309 = vmatprep.subr.mxu0 0.0
    %2310 = vmatpush1.msra.mxu0 %v712
    %2311 = vmatprep.subr.mxu0 0.0
    %2312 = vmatpush1.msra.mxu0 %v713
    %2313 = vmatprep.subr.mxu0 0.0
    %2314 = vmatpush1.msra.mxu0 %v714
    %2315 = vmatprep.subr.mxu0 0.0
    %2316 = vmatpush1.msra.mxu0 %v715
    %2317 = vmatprep.mubr.f32.mxu0 %v894
    %2318 = vmatmul.mubr.f32.gmra.mrb[0].mxu0 %v71
    %v2319 = vpop.f32.mrb[0].mxu0
    %v2320 = vadd.f32 %v2250, %v2319
    %v2321 = vpop.f32.mrb[0].mxu0
    %2322 = vdwg.mxu0
    %2323 = vmatprep.subr.mxu0 0.0
    %2324 = vmatpush1.msra.mxu0 %v716
    %2325 = vmatprep.subr.mxu0 0.0
    %2326 = vmatpush1.msra.mxu0 %v717
    %2327 = vmatprep.subr.mxu0 0.0
    %2328 = vmatpush1.msra.mxu0 %v718
    %2329 = vmatprep.subr.mxu0 0.0
    %2330 = vmatpush1.msra.mxu0 %v719
    %2331 = vmatprep.subr.mxu0 0.0
    %2332 = vmatpush1.msra.mxu0 %v720
    %2333 = vmatprep.subr.mxu0 0.0
    %2334 = vmatpush1.msra.mxu0 %v721
    %2335 = vmatprep.subr.mxu0 0.0
    %2336 = vmatpush1.msra.mxu0 %v722
    %2337 = vmatprep.subr.mxu0 0.0
    %2338 = vmatpush1.msra.mxu0 %v723
    %2339 = vmatprep.subr.mxu0 0.0
    %2340 = vmatpush1.msra.mxu0 %v724
    %2341 = vmatprep.subr.mxu0 0.0
    %2342 = vmatpush1.msra.mxu0 %v725
    %2343 = vmatprep.subr.mxu0 0.0
    %2344 = vmatpush1.msra.mxu0 %v726
    %2345 = vmatprep.subr.mxu0 0.0
    %2346 = vmatpush1.msra.mxu0 %v727
    %2347 = vmatprep.subr.mxu0 0.0
    %2348 = vmatpush1.msra.mxu0 %v728
    %2349 = vmatprep.subr.mxu0 0.0
    %2350 = vmatpush1.msra.mxu0 %v729
    %2351 = vmatprep.subr.mxu0 0.0
    %2352 = vmatpush1.msra.mxu0 %v730
    %2353 = vmatprep.subr.mxu0 0.0
    %2354 = vmatpush1.msra.mxu0 %v731
    %2355 = vmatprep.subr.mxu0 0.0
    %2356 = vmatpush1.msra.mxu0 %v732
    %2357 = vmatprep.subr.mxu0 0.0
    %2358 = vmatpush1.msra.mxu0 %v733
    %2359 = vmatprep.subr.mxu0 0.0
    %2360 = vmatpush1.msra.mxu0 %v734
    %2361 = vmatprep.subr.mxu0 0.0
    %2362 = vmatpush1.msra.mxu0 %v735
    %2363 = vmatprep.subr.mxu0 0.0
    %2364 = vmatpush1.msra.mxu0 %v736
    %2365 = vmatprep.subr.mxu0 0.0
    %2366 = vmatpush1.msra.mxu0 %v737
    %2367 = vmatprep.subr.mxu0 0.0
    %2368 = vmatpush1.msra.mxu0 %v738
    %2369 = vmatprep.subr.mxu0 0.0
    %2370 = vmatpush1.msra.mxu0 %v739
    %2371 = vmatprep.subr.mxu0 0.0
    %2372 = vmatpush1.msra.mxu0 %v740
    %2373 = vmatprep.subr.mxu0 0.0
    %2374 = vmatpush1.msra.mxu0 %v741
    %2375 = vmatprep.subr.mxu0 0.0
    %2376 = vmatpush1.msra.mxu0 %v742
    %2377 = vmatprep.subr.mxu0 0.0
    %2378 = vmatpush1.msra.mxu0 %v743
    %2379 = vmatprep.subr.mxu0 0.0
    %2380 = vmatpush1.msra.mxu0 %v744
    %2381 = vmatprep.subr.mxu0 0.0
    %2382 = vmatpush1.msra.mxu0 %v745
    %2383 = vmatprep.subr.mxu0 0.0
    %2384 = vmatpush1.msra.mxu0 %v746
    %2385 = vmatprep.subr.mxu0 0.0
    %2386 = vmatpush1.msra.mxu0 %v747
    %2387 = vmatprep.mubr.f32.mxu0 %v895
    %2388 = vmatmul.mubr.f32.gmra.mrb[0].mxu0 %v72
    %v2389 = vpop.f32.mrb[0].mxu0
    %v2390 = vadd.f32 %v2320, %v2389
    %v2391 = vpop.f32.mrb[0].mxu0
    %2392 = vdwg.mxu0
    %2393 = vmatprep.subr.mxu0 0.0
    %2394 = vmatpush1.msra.mxu0 %v748
    %2395 = vmatprep.subr.mxu0 0.0
    %2396 = vmatpush1.msra.mxu0 %v749
    %2397 = vmatprep.subr.mxu0 0.0
    %2398 = vmatpush1.msra.mxu0 %v750
    %2399 = vmatprep.subr.mxu0 0.0
    %2400 = vmatpush1.msra.mxu0 %v751
    %2401 = vmatprep.subr.mxu0 0.0
    %2402 = vmatpush1.msra.mxu0 %v752
    %2403 = vmatprep.subr.mxu0 0.0
    %2404 = vmatpush1.msra.mxu0 %v753
    %2405 = vmatprep.subr.mxu0 0.0
    %2406 = vmatpush1.msra.mxu0 %v754
    %2407 = vmatprep.subr.mxu0 0.0
    %2408 = vmatpush1.msra.mxu0 %v755
    %2409 = vmatprep.subr.mxu0 0.0
    %2410 = vmatpush1.msra.mxu0 %v756
    %2411 = vmatprep.subr.mxu0 0.0
    %2412 = vmatpush1.msra.mxu0 %v757
    %2413 = vmatprep.subr.mxu0 0.0
    %2414 = vmatpush1.msra.mxu0 %v758
    %2415 = vmatprep.subr.mxu0 0.0
    %2416 = vmatpush1.msra.mxu0 %v759
    %2417 = vmatprep.subr.mxu0 0.0
    %2418 = vmatpush1.msra.mxu0 %v760
    %2419 = vmatprep.subr.mxu0 0.0
    %2420 = vmatpush1.msra.mxu0 %v761
    %2421 = vmatprep.subr.mxu0 0.0
    %2422 = vmatpush1.msra.mxu0 %v762
    %2423 = vmatprep.subr.mxu0 0.0
    %2424 = vmatpush1.msra.mxu0 %v763
    %2425 = vmatprep.subr.mxu0 0.0
    %2426 = vmatpush1.msra.mxu0 %v764
    %2427 = vmatprep.subr.mxu0 0.0
    %2428 = vmatpush1.msra.mxu0 %v765
    %2429 = vmatprep.subr.mxu0 0.0
    %2430 = vmatpush1.msra.mxu0 %v766
    %2431 = vmatprep.subr.mxu0 0.0
    %2432 = vmatpush1.msra.mxu0 %v767
    %2433 = vmatprep.subr.mxu0 0.0
    %2434 = vmatpush1.msra.mxu0 %v768
    %2435 = vmatprep.subr.mxu0 0.0
    %2436 = vmatpush1.msra.mxu0 %v769
    %2437 = vmatprep.subr.mxu0 0.0
    %2438 = vmatpush1.msra.mxu0 %v770
    %2439 = vmatprep.subr.mxu0 0.0
    %2440 = vmatpush1.msra.mxu0 %v771
    %2441 = vmatprep.subr.mxu0 0.0
    %2442 = vmatpush1.msra.mxu0 %v772
    %2443 = vmatprep.subr.mxu0 0.0
    %2444 = vmatpush1.msra.mxu0 %v773
    %2445 = vmatprep.subr.mxu0 0.0
    %2446 = vmatpush1.msra.mxu0 %v774
    %2447 = vmatprep.subr.mxu0 0.0
    %2448 = vmatpush1.msra.mxu0 %v775
    %2449 = vmatprep.subr.mxu0 0.0
    %2450 = vmatpush1.msra.mxu0 %v776
    %2451 = vmatprep.subr.mxu0 0.0
    %2452 = vmatpush1.msra.mxu0 %v777
    %2453 = vmatprep.subr.mxu0 0.0
    %2454 = vmatpush1.msra.mxu0 %v778
    %2455 = vmatprep.subr.mxu0 0.0
    %2456 = vmatpush1.msra.mxu0 %v779
    %2457 = vmatprep.mubr.f32.mxu0 %v896
    %2458 = vmatmul.mubr.f32.gmra.mrb[0].mxu0 %v73
    %v2459 = vpop.f32.mrb[0].mxu0
    %v2460 = vadd.f32 %v2390, %v2459
    %v2461 = vpop.f32.mrb[0].mxu0
    %2462 = vdwg.mxu0
    %2463 = vmatprep.subr.mxu0 0.0
    %2464 = vmatpush1.msra.mxu0 %v780
    %2465 = vmatprep.subr.mxu0 0.0
    %2466 = vmatpush1.msra.mxu0 %v781
    %2467 = vmatprep.subr.mxu0 0.0
    %2468 = vmatpush1.msra.mxu0 %v782
    %2469 = vmatprep.subr.mxu0 0.0
    %2470 = vmatpush1.msra.mxu0 %v783
    %2471 = vmatprep.subr.mxu0 0.0
    %2472 = vmatpush1.msra.mxu0 %v784
    %2473 = vmatprep.subr.mxu0 0.0
    %2474 = vmatpush1.msra.mxu0 %v785
    %2475 = vmatprep.subr.mxu0 0.0
    %2476 = vmatpush1.msra.mxu0 %v786
    %2477 = vmatprep.subr.mxu0 0.0
    %2478 = vmatpush1.msra.mxu0 %v787
    %2479 = vmatprep.subr.mxu0 0.0
    %2480 = vmatpush1.msra.mxu0 %v788
    %2481 = vmatprep.subr.mxu0 0.0
    %2482 = vmatpush1.msra.mxu0 %v789
    %2483 = vmatprep.subr.mxu0 0.0
    %2484 = vmatpush1.msra.mxu0 %v790
    %2485 = vmatprep.subr.mxu0 0.0
    %2486 = vmatpush1.msra.mxu0 %v791
    %2487 = vmatprep.subr.mxu0 0.0
    %2488 = vmatpush1.msra.mxu0 %v792
    %2489 = vmatprep.subr.mxu0 0.0
    %2490 = vmatpush1.msra.mxu0 %v793
    %2491 = vmatprep.subr.mxu0 0.0
    %2492 = vmatpush1.msra.mxu0 %v794
    %2493 = vmatprep.subr.mxu0 0.0
    %2494 = vmatpush1.msra.mxu0 %v795
    %2495 = vmatprep.subr.mxu0 0.0
    %2496 = vmatpush1.msra.mxu0 %v796
    %2497 = vmatprep.subr.mxu0 0.0
    %2498 = vmatpush1.msra.mxu0 %v797
    %2499 = vmatprep.subr.mxu0 0.0
    %2500 = vmatpush1.msra.mxu0 %v798
    %2501 = vmatprep.subr.mxu0 0.0
    %2502 = vmatpush1.msra.mxu0 %v799
    %2503 = vmatprep.subr.mxu0 0.0
    %2504 = vmatpush1.msra.mxu0 %v800
    %2505 = vmatprep.subr.mxu0 0.0
    %2506 = vmatpush1.msra.mxu0 %v801
    %2507 = vmatprep.subr.mxu0 0.0
    %2508 = vmatpush1.msra.mxu0 %v802
    %2509 = vmatprep.subr.mxu0 0.0
    %2510 = vmatpush1.msra.mxu0 %v803
    %2511 = vmatprep.subr.mxu0 0.0
    %2512 = vmatpush1.msra.mxu0 %v804
    %2513 = vmatprep.subr.mxu0 0.0
    %2514 = vmatpush1.msra.mxu0 %v805
    %2515 = vmatprep.subr.mxu0 0.0
    %2516 = vmatpush1.msra.mxu0 %v806
    %2517 = vmatprep.subr.mxu0 0.0
    %2518 = vmatpush1.msra.mxu0 %v807
    %2519 = vmatprep.subr.mxu0 0.0
    %2520 = vmatpush1.msra.mxu0 %v808
    %2521 = vmatprep.subr.mxu0 0.0
    %2522 = vmatpush1.msra.mxu0 %v809
    %2523 = vmatprep.subr.mxu0 0.0
    %2524 = vmatpush1.msra.mxu0 %v810
    %2525 = vmatprep.subr.mxu0 0.0
    %2526 = vmatpush1.msra.mxu0 %v811
    %2527 = vmatprep.mubr.f32.mxu0 %v897
    %2528 = vmatmul.mubr.f32.gmra.mrb[0].mxu0 %v74
    %v2529 = vpop.f32.mrb[0].mxu0
    %v2530 = vadd.f32 %v2460, %v2529
    %v2531 = vpop.f32.mrb[0].mxu0
    %2532 = vdwg.mxu0
    %2533 = vmatprep.subr.mxu0 0.0
    %2534 = vmatpush1.msra.mxu0 %v812
    %2535 = vmatprep.subr.mxu0 0.0
    %2536 = vmatpush1.msra.mxu0 %v813
    %2537 = vmatprep.subr.mxu0 0.0
    %2538 = vmatpush1.msra.mxu0 %v814
    %2539 = vmatprep.subr.mxu0 0.0
    %2540 = vmatpush1.msra.mxu0 %v815
    %2541 = vmatprep.subr.mxu0 0.0
    %2542 = vmatpush1.msra.mxu0 %v816
    %2543 = vmatprep.subr.mxu0 0.0
    %2544 = vmatpush1.msra.mxu0 %v817
    %2545 = vmatprep.subr.mxu0 0.0
    %2546 = vmatpush1.msra.mxu0 %v818
    %2547 = vmatprep.subr.mxu0 0.0
    %2548 = vmatpush1.msra.mxu0 %v819
    %2549 = vmatprep.subr.mxu0 0.0
    %2550 = vmatpush1.msra.mxu0 %v820
    %2551 = vmatprep.subr.mxu0 0.0
    %2552 = vmatpush1.msra.mxu0 %v821
    %2553 = vmatprep.subr.mxu0 0.0
    %2554 = vmatpush1.msra.mxu0 %v822
    %2555 = vmatprep.subr.mxu0 0.0
    %2556 = vmatpush1.msra.mxu0 %v823
    %2557 = vmatprep.subr.mxu0 0.0
    %2558 = vmatpush1.msra.mxu0 %v824
    %2559 = vmatprep.subr.mxu0 0.0
    %2560 = vmatpush1.msra.mxu0 %v825
    %2561 = vmatprep.subr.mxu0 0.0
    %2562 = vmatpush1.msra.mxu0 %v826
    %2563 = vmatprep.subr.mxu0 0.0
    %2564 = vmatpush1.msra.mxu0 %v827
    %2565 = vmatprep.subr.mxu0 0.0
    %2566 = vmatpush1.msra.mxu0 %v828
    %2567 = vmatprep.subr.mxu0 0.0
    %2568 = vmatpush1.msra.mxu0 %v829
    %2569 = vmatprep.subr.mxu0 0.0
    %2570 = vmatpush1.msra.mxu0 %v830
    %2571 = vmatprep.subr.mxu0 0.0
    %2572 = vmatpush1.msra.mxu0 %v831
    %2573 = vmatprep.subr.mxu0 0.0
    %2574 = vmatpush1.msra.mxu0 %v832
    %2575 = vmatprep.subr.mxu0 0.0
    %2576 = vmatpush1.msra.mxu0 %v833
    %2577 = vmatprep.subr.mxu0 0.0
    %2578 = vmatpush1.msra.mxu0 %v834
    %2579 = vmatprep.subr.mxu0 0.0
    %2580 = vmatpush1.msra.mxu0 %v835
    %2581 = vmatprep.subr.mxu0 0.0
    %2582 = vmatpush1.msra.mxu0 %v836
    %2583 = vmatprep.subr.mxu0 0.0
    %2584 = vmatpush1.msra.mxu0 %v837
    %2585 = vmatprep.subr.mxu0 0.0
    %2586 = vmatpush1.msra.mxu0 %v838
    %2587 = vmatprep.subr.mxu0 0.0
    %2588 = vmatpush1.msra.mxu0 %v839
    %2589 = vmatprep.subr.mxu0 0.0
    %2590 = vmatpush1.msra.mxu0 %v840
    %2591 = vmatprep.subr.mxu0 0.0
    %2592 = vmatpush1.msra.mxu0 %v841
    %2593 = vmatprep.subr.mxu0 0.0
    %2594 = vmatpush1.msra.mxu0 %v842
    %2595 = vmatprep.subr.mxu0 0.0
    %2596 = vmatpush1.msra.mxu0 %v843
    %2597 = vmatprep.mubr.f32.mxu0 %v898
    %2598 = vmatmul.mubr.f32.gmra.mrb[0].mxu0 %v75
    %v2599 = vpop.f32.mrb[0].mxu0
    %v2600 = vadd.f32 %v2530, %v2599
    %v2601 = vpop.f32.mrb[0].mxu0
    %2602 = vdwg.mxu0
    %2603 = vst [vmem:[#allocation8] sm:$0xf] %v2600
    // Predicated region
    $region26: #{tpu_custom_call.1} parent=1 // pred_check
      _
    $region27: #{tpu_custom_call.1} parent=1 // pred_check_branch
      %2605 = sbr.rel (0) target = $region29
    $region28: #{tpu_custom_call.1} parent=1 // pred_region
      %s2607 = ssub.s32 64, 64
      %2608 = vsyncadd [#allocation4], %s2607
      %s2610 = sshll.u32 [#allocation8], 4
      %s2611 = int_to_ptr.vmem [resolvable:$true] %s2610
      %2613 = dma.vmem_to_hbm [thread:$0]  %s2611, 64, %s3, [#allocation4]
    $region29: #{tpu_custom_call.1} parent=1 // pred_fallthru
      _
    // Predicated region
    $region30: #{tpu_custom_call.1} parent=1 // pred_check
      _
    $region31: #{tpu_custom_call.1} parent=1 // pred_check_branch
      %2615 = sbr.rel (0) target = $region33
    $region32: #{tpu_custom_call.1} parent=1 // pred_region
      %2616 = dma.done [#allocation4], 64
    $region33: #{tpu_custom_call.1} parent=1 // pred_fallthru
      _
    %2617 = vsyncpa [#allocation3], 1
    %2618 = vsyncpa [#allocation6], 1
    %2619 = vsyncpa [#allocation4], 1

</llo_original>
